<compile_context>
chip_gen: v6e
topology: v6e:2x2x1
jax: 0.10.0
libtpu: 0.0.40
codegen_flags: <defaults>
</compile_context>

<pallas_src>
import numpy as np
import jax
import jax.numpy as jnp
from jax.experimental import pallas as pl
from jax.experimental.pallas import tpu as pltpu

F32 = jnp.float32
BF16 = jnp.bfloat16

T_IN = 750            # input time samples (pinned by Linear(736) = 32*23)
K1 = 51               # firstConv taps
KIN = 2 * K1          # 102 im2col rows (2 EEG rows x 51 taps)
CH = 32               # channels after the depthwise conv
W2 = 187              # time after AvgPool(1,4)
W2P = W2 + 14         # zero-padded width for the 15-tap separable conv
KSEP = 15             # separable conv taps
W3 = 23               # time after AvgPool(1,8)
NCLS = 2              # classifier outputs


def _elu(v):
    return jnp.where(v > 0, v, jnp.exp(jnp.minimum(v, 0.0)) - 1.0)


# ------------------------------ kernel --------------------------------------
def eegnet_kernel(xc_ref, wbig_ref, b2_ref, p4_ref, wcat_ref, b3_ref,
                  wl2_ref, blin_ref, out_ref):
    tb = out_ref.shape[0]                       # samples per grid step (static)
    wbig = wbig_ref[...]                        # (32, 102)  bf16
    b2 = b2_ref[...]                            # (32, 1)    f32
    p4 = p4_ref[...]                            # (750, 201) bf16
    wcat = wcat_ref[...]                        # (32, 480)  bf16
    b3 = b3_ref[...]                            # (32, 1)    f32
    wl0 = wl2_ref[0]                            # (32, 187)  f32
    wl1 = wl2_ref[1]
    blin = blin_ref[...]                        # (1, 128)   f32
    lane = jax.lax.broadcasted_iota(jnp.int32, (1, 128), 1)

    rows = []
    for s in range(tb):                         # static unroll over the sample tile
        xs = xc_ref[s]                                                   # (102, 750) bf16
        # firstConv + BN1 + depthwiseConv + BN2 fused into ONE MXU matmul.
        z2 = jnp.dot(wbig, xs, preferred_element_type=F32) + b2         # (32, 750) f32
        a2 = _elu(z2)                                                    # ELU on VPU, f32
        # AvgPool(1,4) as an MXU matmul; the constant matrix also writes the
        # (0,7) zero padding needed by the separable conv.  Dropout = identity.
        a2p = jnp.dot(a2.astype(BF16), p4, preferred_element_type=F32)  # (32, 201) f32
        a2pb = a2p.astype(BF16)
        # seperableConv + BN3: unfold the 15 taps along K and run ONE matmul.
        r = jnp.concatenate([a2pb[:, k:k + W2] for k in range(KSEP)],
                            axis=0)                                      # (480, 187) bf16
        z3 = jnp.dot(wcat, r, preferred_element_type=F32) + b3          # (32, 187) f32
        a3 = _elu(z3)
        # AvgPool(1,8) + flatten + Linear(736,2), folded into wl2 (VPU + reduce).
        y0 = jnp.sum(a3 * wl0)
        y1 = jnp.sum(a3 * wl1)
        rows.append(jnp.where(lane == 0, y0,
                              jnp.where(lane == 1, y1, 0.0)) + blin)     # (1, 128)
    out_ref[...] = jnp.concatenate(rows, axis=0)                         # (tb, 128)


# --------------------------- host-side plumbing -----------------------------
def _im2col(x):
    """(B, 1, 2, 750) -> (B, 102, 750); row h*51+k holds x_pad[:, h, k:k+750]."""
    B = x.shape[0]
    xp = jnp.pad(x[:, 0], ((0, 0), (0, 0), (25, 25)))            # (B, 2, 800)
    idx = jnp.arange(K1)[:, None] + jnp.arange(T_IN)[None, :]    # (51, 750)
    return xp[:, :, idx].reshape(B, KIN, T_IN)


def fuse_params(p):
    """Fold eval-mode BN, the depthwise conv, AvgPool(1,8) and the classifier
    into the MXU/VPU-friendly fused weights used by the kernel."""
    c = jnp.arange(CH) // 2                         # input channel of each depthwise output
    s1c, b1c = p['s1'][c], p['b1'][c]
    w1c = p['w1'][c]                                # (32, 51)
    # firstConv*BN1*depthwise*BN2  ->  Wbig (32, 102) + bias
    wbig = jnp.concatenate(
        [(p['s2'] * p['dw'][:, 0] * s1c)[:, None] * w1c,
         (p['s2'] * p['dw'][:, 1] * s1c)[:, None] * w1c], axis=1)
    b2_eff = p['b2'] + p['s2'] * (p['dw'][:, 0] + p['dw'][:, 1]) * b1c

    # AvgPool(1,4) matrix producing the zero-padded (width 201) separable input.
    t4 = jnp.arange(T_IN)[:, None]
    j4 = jnp.arange(W2P)[None, :]
    p4 = jnp.where((j4 >= 7) & (j4 < 7 + W2) & (t4 // 4 == j4 - 7),
                   0.25, 0.0).astype(F32)                         # (750, 201)

    # Separable conv: 15 taps concatenated along K, BN3 scale folded in.
    wcat = (p['s3'][:, None, None] * p['wsep']).transpose(0, 2, 1)  # (32, 15, 32)
    wcat = wcat.reshape(CH, KSEP * CH)                              # (32, 480)

    # AvgPool(1,8) + Linear folded into one (2, 32, 187) elementwise weight.
    tau = jnp.arange(W2)
    wlin_r = p['wlin'].reshape(NCLS, CH, W3)
    wl2 = wlin_r[:, :, jnp.minimum(tau // 8, W3 - 1)] * 0.125
    wl2 = wl2 * (tau < 8 * W3).astype(F32)[None, None, :]

    blin_pad = jnp.zeros((128,), F32).at[:NCLS].set(p['blin'])[None, :]

    return dict(wbig=wbig.astype(BF16), b2=b2_eff[:, None],
                p4=p4.astype(BF16), wcat=wcat.astype(BF16),
                b3=p['b3'][:, None], wl2=wl2, blin=blin_pad)


def eegnet_forward(x, fp, tb=8):
    """x: (B, 1, 2, 750) float32 (PyTorch NCHW).  Returns (B, 2) logits."""
    B = x.shape[0]
    tb = max(1, min(tb, B))
    Bp = ((B + tb - 1) // tb) * tb
    xc = _im2col(x).astype(BF16)                                  # (B, 102, 750)
    if Bp != B:
        xc = jnp.pad(xc, ((0, Bp - B), (0, 0), (0, 0)))

    flops = Bp * 2 * (CH * KIN * T_IN + CH * T_IN * W2P
                      + CH * (KSEP * CH) * W2 + NCLS * CH * W2)
    bytes_accessed = (int(xc.size) * 2 + int(fp['p4'].size) * 2
                      + int(fp['wbig'].size) * 2 + int(fp['wcat'].size) * 2
                      + int(fp['wl2'].size) * 4 + Bp * 128 * 4)
    cost = pl.CostEstimate(flops=int(flops),
                           transcendentals=int(Bp * CH * (T_IN + W2)),
                           bytes_accessed=int(bytes_accessed))

    out = pl.pallas_call(
        eegnet_kernel,
        out_shape=jax.ShapeDtypeStruct((Bp, 128), F32),
        grid=(Bp // tb,),
        in_specs=[
            pl.BlockSpec((tb, KIN, T_IN), lambda i: (i, 0, 0)),     # im2col tile
            pl.BlockSpec((CH, KIN), lambda i: (0, 0)),              # wbig
            pl.BlockSpec((CH, 1), lambda i: (0, 0)),                # b2
            pl.BlockSpec((T_IN, W2P), lambda i: (0, 0)),            # p4
            pl.BlockSpec((CH, KSEP * CH), lambda i: (0, 0)),        # wcat
            pl.BlockSpec((CH, 1), lambda i: (0, 0)),                # b3
            pl.BlockSpec((NCLS, CH, W2), lambda i: (0, 0, 0)),      # wl2
            pl.BlockSpec((1, 128), lambda i: (0, 0)),               # blin (padded)
        ],
        out_specs=pl.BlockSpec((tb, 128), lambda i: (i, 0)),
        compiler_params=pltpu.CompilerParams(
            dimension_semantics=("parallel",)),                     # megacore on v7x
        cost_estimate=cost,
    )(xc, fp['wbig'], fp['b2'], fp['p4'], fp['wcat'], fp['b3'],
      fp['wl2'], fp['blin'])
    return out[:B, :NCLS]


# --------------------------- parameter setup --------------------------------
def _fold_bn(key, c):
    k1, k2, k3, k4 = jax.random.split(key, 4)
    gamma = 1.0 + 0.1 * jax.random.normal(k1, (c,), F32)
    beta = 0.2 * jax.random.normal(k2, (c,), F32)
    mean = 0.2 * jax.random.normal(k3, (c,), F32)
    var = 0.5 + jax.random.uniform(k4, (c,), F32)
    s = gamma / jnp.sqrt(var + 1e-5)
    return s, beta - mean * s


def init_params(key):
    ks = jax.random.split(key, 8)
    w1 = 0.2 * jax.random.normal(ks[0], (16, K1), F32)          # Conv2d(1,16,(1,51))
    s1, b1 = _fold_bn(ks[1], 16)
    dw = 0.7 * jax.random.normal(ks[2], (CH, 2), F32)           # Conv2d(16,32,(2,1),groups=16)
    s2, b2 = _fold_bn(ks[3], CH)
    wsep = 0.05 * jax.random.normal(ks[4], (CH, CH, KSEP), F32)  # Conv2d(32,32,(1,15))
    s3, b3 = _fold_bn(ks[5], CH)
    wlin = 0.04 * jax.random.normal(ks[6], (NCLS, CH * W3), F32)
    blin = 0.1 * jax.random.normal(ks[7], (NCLS,), F32)
    return dict(w1=w1, s1=s1, b1=b1, dw=dw, s2=s2, b2=b2,
                wsep=wsep, s3=s3, b3=b3, wlin=wlin, blin=blin)


# --------------------------- pure-JAX reference -----------------------------
def eegnet_reference(x, p):
    B = x.shape[0]
    elu = lambda v: jnp.where(v > 0, v, jnp.exp(jnp.minimum(v, 0.0)) - 1.0)
    dn = ('NCHW', 'OIHW', 'NCHW')
    y = jax.lax.conv_general_dilated(x, p['w1'].reshape(16, 1, 1, K1), (1, 1),
                                     ((0, 0), (25, 25)), dimension_numbers=dn)
    y = y * p['s1'].reshape(1, 16, 1, 1) + p['b1'].reshape(1, 16, 1, 1)
    y = jax.lax.conv_general_dilated(y, p['dw'].reshape(CH, 1, 2, 1), (1, 1),
                                     ((0, 0), (0, 0)), dimension_numbers=dn,
                                     feature_group_count=16)
    y = elu(y * p['s2'].reshape(1, CH, 1, 1) + p['b2'].reshape(1, CH, 1, 1))
    y = y[..., :748].reshape(B, CH, 1, W2, 4).mean(-1)
    y = jax.lax.conv_general_dilated(y, p['wsep'].reshape(CH, CH, 1, KSEP), (1, 1),
                                     ((0, 0), (7, 7)), dimension_numbers=dn)
    y = elu(y * p['s3'].reshape(1, CH, 1, 1) + p['b3'].reshape(1, CH, 1, 1))
    y = y[..., :184].reshape(B, CH, 1, W3, 8).mean(-1)
    return y.reshape(B, CH * W3) @ p['wlin'].T + p['blin']


if __name__ == "__main__":
    key = jax.random.PRNGKey(0)
    kx, kp = jax.random.split(key)
    B = 2
    # Smallest shape consistent with the module: Linear expects 736 = 32*23
    # flattened features, which pins the input to (B, 1, 2, 750).
    x = jax.random.normal(kx, (B, 1, 2, T_IN), F32)
    raw = init_params(kp)
    fused = fuse_params(raw)

    y = eegnet_forward(x, fused)
    y = jax.block_until_ready(y)

    y_ref = eegnet_reference(x, raw)
    assert y.shape == (B, NCLS)
    # Tolerance covers bf16 MXU operands (f32 accumulation), per perf feedback.
    assert np.allclose(np.asarray(y), np.asarray(y_ref), atol=3e-2, rtol=3e-2), \
        (np.asarray(y), np.asarray(y_ref))
    print("KERNEL_OK")
</pallas_src>

<mosaic_0001>
module attributes {stable_mosaic.version = 11 : i64} {
  func.func @eegnet_kernel(%arg0: i32, %arg1: memref<2x102x750xbf16, #tpu.memory_space<vmem>>, %arg2: memref<32x102xbf16, #tpu.memory_space<vmem>>, %arg3: memref<32x1xf32, #tpu.memory_space<vmem>>, %arg4: memref<750x201xbf16, #tpu.memory_space<vmem>>, %arg5: memref<32x480xbf16, #tpu.memory_space<vmem>>, %arg6: memref<32x1xf32, #tpu.memory_space<vmem>>, %arg7: memref<2x32x187xf32, #tpu.memory_space<vmem>>, %arg8: memref<1x128xf32, #tpu.memory_space<vmem>>, %arg9: memref<2x128xf32, #tpu.memory_space<vmem>>) attributes {dimension_semantics = [#tpu.dimension_semantics<parallel>], iteration_bounds = array<i64: 1>, scalar_prefetch = 0 : i64, scratch_operands = 0 : i64, tpu.core_type = #tpu.core_type<tc>, window_params = [{transform_indices = @transform_0, window_bounds = array<i64: 2, 102, 750>}, {pipeline_mode = #tpu.pipeline_mode<synchronous>, transform_indices = @transform_1, window_bounds = array<i64: 32, 102>}, {pipeline_mode = #tpu.pipeline_mode<synchronous>, transform_indices = @transform_2, window_bounds = array<i64: 32, 1>}, {pipeline_mode = #tpu.pipeline_mode<synchronous>, transform_indices = @transform_3, window_bounds = array<i64: 750, 201>}, {pipeline_mode = #tpu.pipeline_mode<synchronous>, transform_indices = @transform_4, window_bounds = array<i64: 32, 480>}, {pipeline_mode = #tpu.pipeline_mode<synchronous>, transform_indices = @transform_5, window_bounds = array<i64: 32, 1>}, {pipeline_mode = #tpu.pipeline_mode<synchronous>, transform_indices = @transform_6, window_bounds = array<i64: 2, 32, 187>}, {pipeline_mode = #tpu.pipeline_mode<synchronous>, transform_indices = @transform_7, window_bounds = array<i64: 1, 128>}, {transform_indices = @transform_8, window_bounds = array<i64: 2, 128>}]} {
    %c0 = arith.constant 0 : index
    %c0_0 = arith.constant 0 : index
    %0 = vector.load %arg2[%c0, %c0_0] : memref<32x102xbf16, #tpu.memory_space<vmem>>, vector<32x102xbf16>
    %c0_1 = arith.constant 0 : index
    %c0_2 = arith.constant 0 : index
    %1 = vector.load %arg3[%c0_1, %c0_2] : memref<32x1xf32, #tpu.memory_space<vmem>>, vector<32x1xf32>
    %c0_3 = arith.constant 0 : index
    %c0_4 = arith.constant 0 : index
    %2 = vector.load %arg4[%c0_3, %c0_4] : memref<750x201xbf16, #tpu.memory_space<vmem>>, vector<750x201xbf16>
    %c0_5 = arith.constant 0 : index
    %c0_6 = arith.constant 0 : index
    %3 = vector.load %arg5[%c0_5, %c0_6] : memref<32x480xbf16, #tpu.memory_space<vmem>>, vector<32x480xbf16>
    %c0_7 = arith.constant 0 : index
    %c0_8 = arith.constant 0 : index
    %4 = vector.load %arg6[%c0_7, %c0_8] : memref<32x1xf32, #tpu.memory_space<vmem>>, vector<32x1xf32>
    %c0_9 = arith.constant 0 : index
    %c0_10 = arith.constant 0 : index
    %c0_11 = arith.constant 0 : index
    %5 = vector.load %arg7[%c0_9, %c0_10, %c0_11] : memref<2x32x187xf32, #tpu.memory_space<vmem>>, vector<1x32x187xf32>
    %6 = vector.shape_cast %5 : vector<1x32x187xf32> to vector<32x187xf32>
    %c1 = arith.constant 1 : index
    %c0_12 = arith.constant 0 : index
    %c0_13 = arith.constant 0 : index
    %7 = vector.load %arg7[%c1, %c0_12, %c0_13] : memref<2x32x187xf32, #tpu.memory_space<vmem>>, vector<1x32x187xf32>
    %8 = vector.shape_cast %7 : vector<1x32x187xf32> to vector<32x187xf32>
    %c0_14 = arith.constant 0 : index
    %c0_15 = arith.constant 0 : index
    %9 = vector.load %arg8[%c0_14, %c0_15] : memref<1x128xf32, #tpu.memory_space<vmem>>, vector<1x128xf32>
    %10 = tpu.iota {dimensions = array<i32: 1>} : vector<1x128xi32>
    %c0_16 = arith.constant 0 : index
    %c0_17 = arith.constant 0 : index
    %c0_18 = arith.constant 0 : index
    %11 = vector.load %arg1[%c0_16, %c0_17, %c0_18] : memref<2x102x750xbf16, #tpu.memory_space<vmem>>, vector<1x102x750xbf16>
    %12 = vector.shape_cast %11 : vector<1x102x750xbf16> to vector<102x750xbf16>
    %cst = arith.constant dense<0.000000e+00> : vector<32x750xf32>
    %13 = tpu.matmul %0, %12, %cst {dimension_numbers = #tpu.dot_dimension_numbers<[1], [0], [0], [1], [0, 0, 1, 1], [], []>} : vector<32x102xbf16>, vector<102x750xbf16>, vector<32x750xf32> -> vector<32x750xf32>
    %14 = vector.broadcast %1 : vector<32x1xf32> to vector<32x750xf32>
    %15 = arith.addf %13, %14 : vector<32x750xf32>
    %cst_19 = arith.constant 0.000000e+00 : f32
    %16 = vector.broadcast %cst_19 : f32 to vector<32x750xf32>
    %17 = arith.cmpf ogt, %15, %16 : vector<32x750xf32>
    %cst_20 = arith.constant 0.000000e+00 : f32
    %18 = vector.broadcast %cst_20 : f32 to vector<32x750xf32>
    %19 = arith.minimumf %15, %18 : vector<32x750xf32>
    %20 = math.exp %19 : vector<32x750xf32>
    %cst_21 = arith.constant 1.000000e+00 : f32
    %21 = vector.broadcast %cst_21 : f32 to vector<32x750xf32>
    %22 = arith.subf %20, %21 : vector<32x750xf32>
    %23 = arith.select %17, %15, %22 : vector<32x750xi1>, vector<32x750xf32>
    %24 = arith.truncf %23 : vector<32x750xf32> to vector<32x750xbf16>
    %cst_22 = arith.constant dense<0.000000e+00> : vector<32x201xf32>
    %25 = tpu.matmul %24, %2, %cst_22 {dimension_numbers = #tpu.dot_dimension_numbers<[1], [0], [0], [1], [0, 0, 1, 1], [], []>} : vector<32x750xbf16>, vector<750x201xbf16>, vector<32x201xf32> -> vector<32x201xf32>
    %26 = arith.truncf %25 : vector<32x201xf32> to vector<32x201xbf16>
    %27 = vector.extract_strided_slice %26 {offsets = [0, 0], sizes = [32, 187], strides = [1, 1]} : vector<32x201xbf16> to vector<32x187xbf16>
    %28 = vector.extract_strided_slice %26 {offsets = [0, 1], sizes = [32, 187], strides = [1, 1]} : vector<32x201xbf16> to vector<32x187xbf16>
    %29 = vector.extract_strided_slice %26 {offsets = [0, 2], sizes = [32, 187], strides = [1, 1]} : vector<32x201xbf16> to vector<32x187xbf16>
    %30 = vector.extract_strided_slice %26 {offsets = [0, 3], sizes = [32, 187], strides = [1, 1]} : vector<32x201xbf16> to vector<32x187xbf16>
    %31 = vector.extract_strided_slice %26 {offsets = [0, 4], sizes = [32, 187], strides = [1, 1]} : vector<32x201xbf16> to vector<32x187xbf16>
    %32 = vector.extract_strided_slice %26 {offsets = [0, 5], sizes = [32, 187], strides = [1, 1]} : vector<32x201xbf16> to vector<32x187xbf16>
    %33 = vector.extract_strided_slice %26 {offsets = [0, 6], sizes = [32, 187], strides = [1, 1]} : vector<32x201xbf16> to vector<32x187xbf16>
    %34 = vector.extract_strided_slice %26 {offsets = [0, 7], sizes = [32, 187], strides = [1, 1]} : vector<32x201xbf16> to vector<32x187xbf16>
    %35 = vector.extract_strided_slice %26 {offsets = [0, 8], sizes = [32, 187], strides = [1, 1]} : vector<32x201xbf16> to vector<32x187xbf16>
    %36 = vector.extract_strided_slice %26 {offsets = [0, 9], sizes = [32, 187], strides = [1, 1]} : vector<32x201xbf16> to vector<32x187xbf16>
    %37 = vector.extract_strided_slice %26 {offsets = [0, 10], sizes = [32, 187], strides = [1, 1]} : vector<32x201xbf16> to vector<32x187xbf16>
    %38 = vector.extract_strided_slice %26 {offsets = [0, 11], sizes = [32, 187], strides = [1, 1]} : vector<32x201xbf16> to vector<32x187xbf16>
    %39 = vector.extract_strided_slice %26 {offsets = [0, 12], sizes = [32, 187], strides = [1, 1]} : vector<32x201xbf16> to vector<32x187xbf16>
    %40 = vector.extract_strided_slice %26 {offsets = [0, 13], sizes = [32, 187], strides = [1, 1]} : vector<32x201xbf16> to vector<32x187xbf16>
    %41 = vector.extract_strided_slice %26 {offsets = [0, 14], sizes = [32, 187], strides = [1, 1]} : vector<32x201xbf16> to vector<32x187xbf16>
    %42 = tpu.concatenate %27, %28, %29, %30, %31, %32, %33, %34, %35, %36, %37, %38, %39, %40, %41 in 0 : vector<32x187xbf16>, vector<32x187xbf16>, vector<32x187xbf16>, vector<32x187xbf16>, vector<32x187xbf16>, vector<32x187xbf16>, vector<32x187xbf16>, vector<32x187xbf16>, vector<32x187xbf16>, vector<32x187xbf16>, vector<32x187xbf16>, vector<32x187xbf16>, vector<32x187xbf16>, vector<32x187xbf16>, vector<32x187xbf16> -> vector<480x187xbf16>
    %cst_23 = arith.constant dense<0.000000e+00> : vector<32x187xf32>
    %43 = tpu.matmul %3, %42, %cst_23 {dimension_numbers = #tpu.dot_dimension_numbers<[1], [0], [0], [1], [0, 0, 1, 1], [], []>} : vector<32x480xbf16>, vector<480x187xbf16>, vector<32x187xf32> -> vector<32x187xf32>
    %44 = vector.broadcast %4 : vector<32x1xf32> to vector<32x187xf32>
    %45 = arith.addf %43, %44 : vector<32x187xf32>
    %cst_24 = arith.constant 0.000000e+00 : f32
    %46 = vector.broadcast %cst_24 : f32 to vector<32x187xf32>
    %47 = arith.cmpf ogt, %45, %46 : vector<32x187xf32>
    %cst_25 = arith.constant 0.000000e+00 : f32
    %48 = vector.broadcast %cst_25 : f32 to vector<32x187xf32>
    %49 = arith.minimumf %45, %48 : vector<32x187xf32>
    %50 = math.exp %49 : vector<32x187xf32>
    %cst_26 = arith.constant 1.000000e+00 : f32
    %51 = vector.broadcast %cst_26 : f32 to vector<32x187xf32>
    %52 = arith.subf %50, %51 : vector<32x187xf32>
    %53 = arith.select %47, %45, %52 : vector<32x187xi1>, vector<32x187xf32>
    %54 = arith.mulf %53, %6 : vector<32x187xf32>
    %55 = vector.shape_cast %54 : vector<32x187xf32> to vector<1x32x187xf32>
    %cst_27 = arith.constant dense<0.000000e+00> : vector<1xf32>
    %56 = vector.multi_reduction <add>, %55, %cst_27 [1, 2] : vector<1x32x187xf32> to vector<1xf32>
    %57 = vector.shape_cast %56 : vector<1xf32> to vector<1x1x1xf32>
    %58 = vector.extract %57[0, 0, 0] : f32 from vector<1x1x1xf32>
    %59 = arith.mulf %53, %8 : vector<32x187xf32>
    %60 = vector.shape_cast %59 : vector<32x187xf32> to vector<1x32x187xf32>
    %cst_28 = arith.constant dense<0.000000e+00> : vector<1xf32>
    %61 = vector.multi_reduction <add>, %60, %cst_28 [1, 2] : vector<1x32x187xf32> to vector<1xf32>
    %62 = vector.shape_cast %61 : vector<1xf32> to vector<1x1x1xf32>
    %63 = vector.extract %62[0, 0, 0] : f32 from vector<1x1x1xf32>
    %c0_i32 = arith.constant 0 : i32
    %64 = vector.broadcast %c0_i32 : i32 to vector<1x128xi32>
    %65 = arith.cmpi eq, %10, %64 : vector<1x128xi32>
    %c1_i32 = arith.constant 1 : i32
    %66 = vector.broadcast %c1_i32 : i32 to vector<1x128xi32>
    %67 = arith.cmpi eq, %10, %66 : vector<1x128xi32>
    %cst_29 = arith.constant 0.000000e+00 : f32
    %68 = vector.broadcast %63 : f32 to vector<1x128xf32>
    %69 = vector.broadcast %cst_29 : f32 to vector<1x128xf32>
    %70 = arith.select %67, %68, %69 : vector<1x128xi1>, vector<1x128xf32>
    %71 = vector.broadcast %58 : f32 to vector<1x128xf32>
    %72 = arith.select %65, %71, %70 : vector<1x128xi1>, vector<1x128xf32>
    %73 = arith.addf %72, %9 : vector<1x128xf32>
    %c1_30 = arith.constant 1 : index
    %c0_31 = arith.constant 0 : index
    %c0_32 = arith.constant 0 : index
    %74 = vector.load %arg1[%c1_30, %c0_31, %c0_32] : memref<2x102x750xbf16, #tpu.memory_space<vmem>>, vector<1x102x750xbf16>
    %75 = vector.shape_cast %74 : vector<1x102x750xbf16> to vector<102x750xbf16>
    %cst_33 = arith.constant dense<0.000000e+00> : vector<32x750xf32>
    %76 = tpu.matmul %0, %75, %cst_33 {dimension_numbers = #tpu.dot_dimension_numbers<[1], [0], [0], [1], [0, 0, 1, 1], [], []>} : vector<32x102xbf16>, vector<102x750xbf16>, vector<32x750xf32> -> vector<32x750xf32>
    %77 = vector.broadcast %1 : vector<32x1xf32> to vector<32x750xf32>
    %78 = arith.addf %76, %77 : vector<32x750xf32>
    %cst_34 = arith.constant 0.000000e+00 : f32
    %79 = vector.broadcast %cst_34 : f32 to vector<32x750xf32>
    %80 = arith.cmpf ogt, %78, %79 : vector<32x750xf32>
    %cst_35 = arith.constant 0.000000e+00 : f32
    %81 = vector.broadcast %cst_35 : f32 to vector<32x750xf32>
    %82 = arith.minimumf %78, %81 : vector<32x750xf32>
    %83 = math.exp %82 : vector<32x750xf32>
    %cst_36 = arith.constant 1.000000e+00 : f32
    %84 = vector.broadcast %cst_36 : f32 to vector<32x750xf32>
    %85 = arith.subf %83, %84 : vector<32x750xf32>
    %86 = arith.select %80, %78, %85 : vector<32x750xi1>, vector<32x750xf32>
    %87 = arith.truncf %86 : vector<32x750xf32> to vector<32x750xbf16>
    %cst_37 = arith.constant dense<0.000000e+00> : vector<32x201xf32>
    %88 = tpu.matmul %87, %2, %cst_37 {dimension_numbers = #tpu.dot_dimension_numbers<[1], [0], [0], [1], [0, 0, 1, 1], [], []>} : vector<32x750xbf16>, vector<750x201xbf16>, vector<32x201xf32> -> vector<32x201xf32>
    %89 = arith.truncf %88 : vector<32x201xf32> to vector<32x201xbf16>
    %90 = vector.extract_strided_slice %89 {offsets = [0, 0], sizes = [32, 187], strides = [1, 1]} : vector<32x201xbf16> to vector<32x187xbf16>
    %91 = vector.extract_strided_slice %89 {offsets = [0, 1], sizes = [32, 187], strides = [1, 1]} : vector<32x201xbf16> to vector<32x187xbf16>
    %92 = vector.extract_strided_slice %89 {offsets = [0, 2], sizes = [32, 187], strides = [1, 1]} : vector<32x201xbf16> to vector<32x187xbf16>
    %93 = vector.extract_strided_slice %89 {offsets = [0, 3], sizes = [32, 187], strides = [1, 1]} : vector<32x201xbf16> to vector<32x187xbf16>
    %94 = vector.extract_strided_slice %89 {offsets = [0, 4], sizes = [32, 187], strides = [1, 1]} : vector<32x201xbf16> to vector<32x187xbf16>
    %95 = vector.extract_strided_slice %89 {offsets = [0, 5], sizes = [32, 187], strides = [1, 1]} : vector<32x201xbf16> to vector<32x187xbf16>
    %96 = vector.extract_strided_slice %89 {offsets = [0, 6], sizes = [32, 187], strides = [1, 1]} : vector<32x201xbf16> to vector<32x187xbf16>
    %97 = vector.extract_strided_slice %89 {offsets = [0, 7], sizes = [32, 187], strides = [1, 1]} : vector<32x201xbf16> to vector<32x187xbf16>
    %98 = vector.extract_strided_slice %89 {offsets = [0, 8], sizes = [32, 187], strides = [1, 1]} : vector<32x201xbf16> to vector<32x187xbf16>
    %99 = vector.extract_strided_slice %89 {offsets = [0, 9], sizes = [32, 187], strides = [1, 1]} : vector<32x201xbf16> to vector<32x187xbf16>
    %100 = vector.extract_strided_slice %89 {offsets = [0, 10], sizes = [32, 187], strides = [1, 1]} : vector<32x201xbf16> to vector<32x187xbf16>
    %101 = vector.extract_strided_slice %89 {offsets = [0, 11], sizes = [32, 187], strides = [1, 1]} : vector<32x201xbf16> to vector<32x187xbf16>
    %102 = vector.extract_strided_slice %89 {offsets = [0, 12], sizes = [32, 187], strides = [1, 1]} : vector<32x201xbf16> to vector<32x187xbf16>
    %103 = vector.extract_strided_slice %89 {offsets = [0, 13], sizes = [32, 187], strides = [1, 1]} : vector<32x201xbf16> to vector<32x187xbf16>
    %104 = vector.extract_strided_slice %89 {offsets = [0, 14], sizes = [32, 187], strides = [1, 1]} : vector<32x201xbf16> to vector<32x187xbf16>
    %105 = tpu.concatenate %90, %91, %92, %93, %94, %95, %96, %97, %98, %99, %100, %101, %102, %103, %104 in 0 : vector<32x187xbf16>, vector<32x187xbf16>, vector<32x187xbf16>, vector<32x187xbf16>, vector<32x187xbf16>, vector<32x187xbf16>, vector<32x187xbf16>, vector<32x187xbf16>, vector<32x187xbf16>, vector<32x187xbf16>, vector<32x187xbf16>, vector<32x187xbf16>, vector<32x187xbf16>, vector<32x187xbf16>, vector<32x187xbf16> -> vector<480x187xbf16>
    %cst_38 = arith.constant dense<0.000000e+00> : vector<32x187xf32>
    %106 = tpu.matmul %3, %105, %cst_38 {dimension_numbers = #tpu.dot_dimension_numbers<[1], [0], [0], [1], [0, 0, 1, 1], [], []>} : vector<32x480xbf16>, vector<480x187xbf16>, vector<32x187xf32> -> vector<32x187xf32>
    %107 = vector.broadcast %4 : vector<32x1xf32> to vector<32x187xf32>
    %108 = arith.addf %106, %107 : vector<32x187xf32>
    %cst_39 = arith.constant 0.000000e+00 : f32
    %109 = vector.broadcast %cst_39 : f32 to vector<32x187xf32>
    %110 = arith.cmpf ogt, %108, %109 : vector<32x187xf32>
    %cst_40 = arith.constant 0.000000e+00 : f32
    %111 = vector.broadcast %cst_40 : f32 to vector<32x187xf32>
    %112 = arith.minimumf %108, %111 : vector<32x187xf32>
    %113 = math.exp %112 : vector<32x187xf32>
    %cst_41 = arith.constant 1.000000e+00 : f32
    %114 = vector.broadcast %cst_41 : f32 to vector<32x187xf32>
    %115 = arith.subf %113, %114 : vector<32x187xf32>
    %116 = arith.select %110, %108, %115 : vector<32x187xi1>, vector<32x187xf32>
    %117 = arith.mulf %116, %6 : vector<32x187xf32>
    %118 = vector.shape_cast %117 : vector<32x187xf32> to vector<1x32x187xf32>
    %cst_42 = arith.constant dense<0.000000e+00> : vector<1xf32>
    %119 = vector.multi_reduction <add>, %118, %cst_42 [1, 2] : vector<1x32x187xf32> to vector<1xf32>
    %120 = vector.shape_cast %119 : vector<1xf32> to vector<1x1x1xf32>
    %121 = vector.extract %120[0, 0, 0] : f32 from vector<1x1x1xf32>
    %122 = arith.mulf %116, %8 : vector<32x187xf32>
    %123 = vector.shape_cast %122 : vector<32x187xf32> to vector<1x32x187xf32>
    %cst_43 = arith.constant dense<0.000000e+00> : vector<1xf32>
    %124 = vector.multi_reduction <add>, %123, %cst_43 [1, 2] : vector<1x32x187xf32> to vector<1xf32>
    %125 = vector.shape_cast %124 : vector<1xf32> to vector<1x1x1xf32>
    %126 = vector.extract %125[0, 0, 0] : f32 from vector<1x1x1xf32>
    %c0_i32_44 = arith.constant 0 : i32
    %127 = vector.broadcast %c0_i32_44 : i32 to vector<1x128xi32>
    %128 = arith.cmpi eq, %10, %127 : vector<1x128xi32>
    %c1_i32_45 = arith.constant 1 : i32
    %129 = vector.broadcast %c1_i32_45 : i32 to vector<1x128xi32>
    %130 = arith.cmpi eq, %10, %129 : vector<1x128xi32>
    %cst_46 = arith.constant 0.000000e+00 : f32
    %131 = vector.broadcast %126 : f32 to vector<1x128xf32>
    %132 = vector.broadcast %cst_46 : f32 to vector<1x128xf32>
    %133 = arith.select %130, %131, %132 : vector<1x128xi1>, vector<1x128xf32>
    %134 = vector.broadcast %121 : f32 to vector<1x128xf32>
    %135 = arith.select %128, %134, %133 : vector<1x128xi1>, vector<1x128xf32>
    %136 = arith.addf %135, %9 : vector<1x128xf32>
    %137 = tpu.concatenate %73, %136 in 0 : vector<1x128xf32>, vector<1x128xf32> -> vector<2x128xf32>
    %c0_47 = arith.constant 0 : index
    %c0_48 = arith.constant 0 : index
    %138 = vector.load %arg9[%c0_47, %c0_48] : memref<2x128xf32, #tpu.memory_space<vmem>>, vector<2x128xf32>
    tpu.vector_store %arg9[%c0_47, %c0_48], %137 {strides = array<i32>} : memref<2x128xf32, #tpu.memory_space<vmem>>, vector<2x128xf32>,
    return
  }
  func.func @transform_0(%arg0: i32) -> (i32, i32, i32) {
    %c0_i32 = arith.constant 0 : i32
    %c0_i32_0 = arith.constant 0 : i32
    %c0_i32_1 = arith.constant 0 : i32
    return %arg0, %c0_i32, %c0_i32_0 : i32, i32, i32
  }
  func.func @transform_1(%arg0: i32) -> (i32, i32) {
    %c0_i32 = arith.constant 0 : i32
    %c0_i32_0 = arith.constant 0 : i32
    %c0_i32_1 = arith.constant 0 : i32
    return %c0_i32, %c0_i32_0 : i32, i32
  }
  func.func @transform_2(%arg0: i32) -> (i32, i32) {
    %c0_i32 = arith.constant 0 : i32
    %c0_i32_0 = arith.constant 0 : i32
    %c0_i32_1 = arith.constant 0 : i32
    return %c0_i32, %c0_i32_0 : i32, i32
  }
  func.func @transform_3(%arg0: i32) -> (i32, i32) {
    %c0_i32 = arith.constant 0 : i32
    %c0_i32_0 = arith.constant 0 : i32
    %c0_i32_1 = arith.constant 0 : i32
    return %c0_i32, %c0_i32_0 : i32, i32
  }
  func.func @transform_4(%arg0: i32) -> (i32, i32) {
    %c0_i32 = arith.constant 0 : i32
    %c0_i32_0 = arith.constant 0 : i32
    %c0_i32_1 = arith.constant 0 : i32
    return %c0_i32, %c0_i32_0 : i32, i32
  }
  func.func @transform_5(%arg0: i32) -> (i32, i32) {
    %c0_i32 = arith.constant 0 : i32
    %c0_i32_0 = arith.constant 0 : i32
    %c0_i32_1 = arith.constant 0 : i32
    return %c0_i32, %c0_i32_0 : i32, i32
  }
  func.func @transform_6(%arg0: i32) -> (i32, i32, i32) {
    %c0_i32 = arith.constant 0 : i32
    %c0_i32_0 = arith.constant 0 : i32
    %c0_i32_1 = arith.constant 0 : i32
    %c0_i32_2 = arith.constant 0 : i32
    return %c0_i32, %c0_i32_0, %c0_i32_1 : i32, i32, i32
  }
  func.func @transform_7(%arg0: i32) -> (i32, i32) {
    %c0_i32 = arith.constant 0 : i32
    %c0_i32_0 = arith.constant 0 : i32
    %c0_i32_1 = arith.constant 0 : i32
    return %c0_i32, %c0_i32_0 : i32, i32
  }
  func.func @transform_8(%arg0: i32) -> (i32, i32) {
    %c0_i32 = arith.constant 0 : i32
    %c0_i32_0 = arith.constant 0 : i32
    return %arg0, %c0_i32 : i32, i32
  }
}

</mosaic_0001>

<llo_original>
// kernel: tpu_custom_call.1
$region0: #{tpu_custom_call.1}
  #allocation0 [shape = 'u32[]', space=smem, size = 0x4, offset = 0x4, fixed_abs, tag = 'smem constant byte address 0x4 - core index']
  #allocation1 [shape = 'u32[144,128]{1,0:T(1,128)}', space=vmem, size = 0x12000, scoped, tag = 'internal scratch']
  %s0 = inlined_call_operand.vmem [shape: bf16[2,102,750], index: 0, kind: input, shape index: {}]
  %s1 = inlined_call_operand.vmem [shape: bf16[32,102], index: 1, kind: input, shape index: {}]
  %s2 = inlined_call_operand.vmem [shape: f32[32,1], index: 2, kind: input, shape index: {}]
  %s3 = inlined_call_operand.vmem [shape: bf16[750,201], index: 3, kind: input, shape index: {}]
  %s4 = inlined_call_operand.vmem [shape: bf16[32,480], index: 4, kind: input, shape index: {}]
  %s5 = inlined_call_operand.vmem [shape: f32[32,1], index: 5, kind: input, shape index: {}]
  %s6 = inlined_call_operand.vmem [shape: f32[2,32,187], index: 6, kind: input, shape index: {}]
  %s7 = inlined_call_operand.vmem [shape: f32[1,128], index: 7, kind: input, shape index: {}]
  %s8 = inlined_call_operand.hbm [shape: f32[2,128], index: 8, kind: output, shape index: {}]
  %s9 = sld [smem:[#allocation0]]
  $region42: #{tpu_custom_call.1} parent=0
    _
  %s11 = ssub.s32 1, %s9
  %s12 = scalar_select 0, %s11, %s9
  $region1: #{tpu_custom_call.1} parent=0
    #allocation2 [shape = 'u8[1024]{0}', space=vmem, size = 0x400, scoped, tag = 'output window, operand 0, single buffered']
    #allocation3 [shape = 's32[1]{0}', space=sflag, size = 0x4, scoped, tag = 'scoped memory for tpu_custom_call.1']
    %13 = vsyncpa [#allocation3], 0
    // Predicated region
    $region2: #{tpu_custom_call.1} parent=1 // pred_check
      _
    $region3: #{tpu_custom_call.1} parent=1 // pred_check_branch
      %15 = sbr.rel (0) target = $region5
    $region4: #{tpu_custom_call.1} parent=1 // pred_region
      _
    $region5: #{tpu_custom_call.1} parent=1 // pred_fallthru
      _
    // Predicated region
    $region6: #{tpu_custom_call.1} parent=1 // pred_check
      _
    $region7: #{tpu_custom_call.1} parent=1 // pred_check_branch
      %17 = sbr.rel (0) target = $region9
    $region8: #{tpu_custom_call.1} parent=1 // pred_region
      _
    $region9: #{tpu_custom_call.1} parent=1 // pred_fallthru
      _
    // Predicated region
    $region10: #{tpu_custom_call.1} parent=1 // pred_check
      _
    $region11: #{tpu_custom_call.1} parent=1 // pred_check_branch
      %19 = sbr.rel (0) target = $region13
    $region12: #{tpu_custom_call.1} parent=1 // pred_region
      _
    $region13: #{tpu_custom_call.1} parent=1 // pred_fallthru
      _
    // Predicated region
    $region14: #{tpu_custom_call.1} parent=1 // pred_check
      _
    $region15: #{tpu_custom_call.1} parent=1 // pred_check_branch
      %21 = sbr.rel (0) target = $region17
    $region16: #{tpu_custom_call.1} parent=1 // pred_region
      _
    $region17: #{tpu_custom_call.1} parent=1 // pred_fallthru
      _
    // Predicated region
    $region18: #{tpu_custom_call.1} parent=1 // pred_check
      _
    $region19: #{tpu_custom_call.1} parent=1 // pred_check_branch
      %23 = sbr.rel (0) target = $region21
    $region20: #{tpu_custom_call.1} parent=1 // pred_region
      _
    $region21: #{tpu_custom_call.1} parent=1 // pred_fallthru
      _
    // Predicated region
    $region22: #{tpu_custom_call.1} parent=1 // pred_check
      _
    $region23: #{tpu_custom_call.1} parent=1 // pred_check_branch
      %25 = sbr.rel (0) target = $region25
    $region24: #{tpu_custom_call.1} parent=1 // pred_region
      _
    $region25: #{tpu_custom_call.1} parent=1 // pred_fallthru
      _
    // Predicated region
    $region26: #{tpu_custom_call.1} parent=1 // pred_check
      _
    $region27: #{tpu_custom_call.1} parent=1 // pred_check_branch
      %27 = sbr.rel (0) target = $region29
    $region28: #{tpu_custom_call.1} parent=1 // pred_region
      _
    $region29: #{tpu_custom_call.1} parent=1 // pred_fallthru
      _
    // Predicated region
    $region30: #{tpu_custom_call.1} parent=1 // pred_check
      _
    $region31: #{tpu_custom_call.1} parent=1 // pred_check_branch
      %29 = sbr.rel (0) target = $region33
    $region32: #{tpu_custom_call.1} parent=1 // pred_region
      _
    $region33: #{tpu_custom_call.1} parent=1 // pred_fallthru
      _
    %v31 = vld [vmem:[%s1] sm:$0xf]
    %v32 = vld [vmem:[%s1 + $0x4] sm:$0xf]
    %v33 = vld [vmem:[%s1 + $0x8] sm:$0xf]
    %v34 = vld [vmem:[%s1 + $0xc] sm:$0xf]
    %v35 = vld [vmem:[%s2] sm:$0xff]
    %v36 = vld [vmem:[%s2 + $0x8] sm:$0xff]
    %v37 = vld [vmem:[%s2 + $0x10] sm:$0xff]
    %v38 = vld [vmem:[%s2 + $0x18] sm:$0xff]
    %v39 = vld [vmem:[%s3] sm:$0xff]
    %v40 = vld [vmem:[%s3 + $0x8] sm:$0xff]
    %v41 = vld [vmem:[%s3 + $0x10] sm:$0xff]
    %v42 = vld [vmem:[%s3 + $0x18] sm:$0xff]
    %v43 = vld [vmem:[%s3 + $0x20] sm:$0xff]
    %v44 = vld [vmem:[%s3 + $0x28] sm:$0xff]
    %v45 = vld [vmem:[%s3 + $0x30] sm:$0xff]
    %v46 = vld [vmem:[%s3 + $0x38] sm:$0xff]
    %v47 = vld [vmem:[%s3 + $0x40] sm:$0xff]
    %v48 = vld [vmem:[%s3 + $0x48] sm:$0xff]
    %v49 = vld [vmem:[%s3 + $0x50] sm:$0xff]
    %v50 = vld [vmem:[%s3 + $0x58] sm:$0xff]
    %v51 = vld [vmem:[%s3 + $0x60] sm:$0xff]
    %v52 = vld [vmem:[%s3 + $0x68] sm:$0xff]
    %v53 = vld [vmem:[%s3 + $0x70] sm:$0xff]
    %v54 = vld [vmem:[%s3 + $0x78] sm:$0xff]
    %v55 = vld [vmem:[%s3 + $0x80] sm:$0xff]
    %v56 = vld [vmem:[%s3 + $0x88] sm:$0xff]
    %v57 = vld [vmem:[%s3 + $0x90] sm:$0xff]
    %v58 = vld [vmem:[%s3 + $0x98] sm:$0xff]
    %v59 = vld [vmem:[%s3 + $0xa0] sm:$0xff]
    %v60 = vld [vmem:[%s3 + $0xa8] sm:$0xff]
    %v61 = vld [vmem:[%s3 + $0xb0] sm:$0xff]
    %v62 = vld [vmem:[%s3 + $0xb8] sm:$0xff]
    %v63 = vld [vmem:[%s3 + $0xc0] sm:$0xff]
    %v64 = vld [vmem:[%s3 + $0xc8] sm:$0xff]
    %v65 = vld [vmem:[%s3 + $0xd0] sm:$0xff]
    %v66 = vld [vmem:[%s3 + $0xd8] sm:$0xff]
    %v67 = vld [vmem:[%s3 + $0xe0] sm:$0xff]
    %v68 = vld [vmem:[%s3 + $0xe8] sm:$0xff]
    %v69 = vld [vmem:[%s3 + $0xf0] sm:$0xff]
    %v70 = vld [vmem:[%s3 + $0xf8] sm:$0xff]
    %v71 = vld [vmem:[%s3 + $0x100] sm:$0xff]
    %v72 = vld [vmem:[%s3 + $0x108] sm:$0xff]
    %v73 = vld [vmem:[%s3 + $0x110] sm:$0xff]
    %v74 = vld [vmem:[%s3 + $0x118] sm:$0xff]
    %v75 = vld [vmem:[%s3 + $0x120] sm:$0xff]
    %v76 = vld [vmem:[%s3 + $0x128] sm:$0xff]
    %v77 = vld [vmem:[%s3 + $0x130] sm:$0xff]
    %v78 = vld [vmem:[%s3 + $0x138] sm:$0xff]
    %v79 = vld [vmem:[%s3 + $0x140] sm:$0xff]
    %v80 = vld [vmem:[%s3 + $0x148] sm:$0xff]
    %v81 = vld [vmem:[%s3 + $0x150] sm:$0xff]
    %v82 = vld [vmem:[%s3 + $0x158] sm:$0xff]
    %v83 = vld [vmem:[%s3 + $0x160] sm:$0xff]
    %v84 = vld [vmem:[%s3 + $0x168] sm:$0xff]
    %v85 = vld [vmem:[%s3 + $0x170] sm:$0xff]
    %v86 = vld [vmem:[%s3 + $0x178] sm:$0xff]
    %v87 = vld [vmem:[%s3 + $0x180] sm:$0xff]
    %v88 = vld [vmem:[%s3 + $0x188] sm:$0xff]
    %v89 = vld [vmem:[%s3 + $0x190] sm:$0xff]
    %v90 = vld [vmem:[%s3 + $0x198] sm:$0xff]
    %v91 = vld [vmem:[%s3 + $0x1a0] sm:$0xff]
    %v92 = vld [vmem:[%s3 + $0x1a8] sm:$0xff]
    %v93 = vld [vmem:[%s3 + $0x1b0] sm:$0xff]
    %v94 = vld [vmem:[%s3 + $0x1b8] sm:$0xff]
    %v95 = vld [vmem:[%s3 + $0x1c0] sm:$0xff]
    %v96 = vld [vmem:[%s3 + $0x1c8] sm:$0xff]
    %v97 = vld [vmem:[%s3 + $0x1d0] sm:$0xff]
    %v98 = vld [vmem:[%s3 + $0x1d8] sm:$0xff]
    %v99 = vld [vmem:[%s3 + $0x1e0] sm:$0xff]
    %v100 = vld [vmem:[%s3 + $0x1e8] sm:$0xff]
    %v101 = vld [vmem:[%s3 + $0x1f0] sm:$0xff]
    %v102 = vld [vmem:[%s3 + $0x1f8] sm:$0xff]
    %v103 = vld [vmem:[%s3 + $0x200] sm:$0xff]
    %v104 = vld [vmem:[%s3 + $0x208] sm:$0xff]
    %v105 = vld [vmem:[%s3 + $0x210] sm:$0xff]
    %v106 = vld [vmem:[%s3 + $0x218] sm:$0xff]
    %v107 = vld [vmem:[%s3 + $0x220] sm:$0xff]
    %v108 = vld [vmem:[%s3 + $0x228] sm:$0xff]
    %v109 = vld [vmem:[%s3 + $0x230] sm:$0xff]
    %v110 = vld [vmem:[%s3 + $0x238] sm:$0xff]
    %v111 = vld [vmem:[%s3 + $0x240] sm:$0xff]
    %v112 = vld [vmem:[%s3 + $0x248] sm:$0xff]
    %v113 = vld [vmem:[%s3 + $0x250] sm:$0xff]
    %v114 = vld [vmem:[%s3 + $0x258] sm:$0xff]
    %v115 = vld [vmem:[%s3 + $0x260] sm:$0xff]
    %v116 = vld [vmem:[%s3 + $0x268] sm:$0xff]
    %v117 = vld [vmem:[%s3 + $0x270] sm:$0xff]
    %v118 = vld [vmem:[%s3 + $0x278] sm:$0xff]
    %v119 = vld [vmem:[%s3 + $0x280] sm:$0xff]
    %v120 = vld [vmem:[%s3 + $0x288] sm:$0xff]
    %v121 = vld [vmem:[%s3 + $0x290] sm:$0xff]
    %v122 = vld [vmem:[%s3 + $0x298] sm:$0xff]
    %v123 = vld [vmem:[%s3 + $0x2a0] sm:$0xff]
    %v124 = vld [vmem:[%s3 + $0x2a8] sm:$0xff]
    %v125 = vld [vmem:[%s3 + $0x2b0] sm:$0xff]
    %v126 = vld [vmem:[%s3 + $0x2b8] sm:$0xff]
    %v127 = vld [vmem:[%s3 + $0x2c0] sm:$0xff]
    %v128 = vld [vmem:[%s3 + $0x2c8] sm:$0xff]
    %v129 = vld [vmem:[%s3 + $0x2d0] sm:$0xff]
    %v130 = vld [vmem:[%s3 + $0x2d8] sm:$0xff]
    %v131 = vld [vmem:[%s3 + $0x2e0] sm:$0xff]
    %v132 = vld [vmem:[%s3 + $0x2e8] sm:$0x77]
    %v133 = vld [vmem:[%s4] sm:$0xff]
    %v134 = vld [vmem:[%s4 + $0x8] sm:$0xff]
    %v135 = vld [vmem:[%s4 + $0x10] sm:$0xff]
    %v136 = vld [vmem:[%s4 + $0x18] sm:$0xff]
    %v137 = vld [vmem:[%s4 + $0x20] sm:$0xff]
    %v138 = vld [vmem:[%s4 + $0x28] sm:$0xff]
    %v139 = vld [vmem:[%s4 + $0x30] sm:$0xff]
    %v140 = vld [vmem:[%s4 + $0x38] sm:$0xff]
    %v141 = vld [vmem:[%s5] sm:$0xff]
    %v142 = vld [vmem:[%s5 + $0x8] sm:$0xff]
    %v143 = vld [vmem:[%s5 + $0x10] sm:$0xff]
    %v144 = vld [vmem:[%s5 + $0x18] sm:$0xff]
    %v145 = vld [vmem:[%s6] sm:$0xff]
    %v146 = vld [vmem:[%s6 + $0x8] sm:$0xff]
    %v147 = vld [vmem:[%s6 + $0x10] sm:$0xff]
    %v148 = vld [vmem:[%s6 + $0x18] sm:$0xff]
    %v149 = vld [vmem:[%s6 + $0x20] sm:$0xff]
    %v150 = vld [vmem:[%s6 + $0x28] sm:$0xff]
    %v151 = vld [vmem:[%s6 + $0x30] sm:$0xff]
    %v152 = vld [vmem:[%s6 + $0x38] sm:$0xff]
    %s153 = scalar_lea.vmem %s6, 64
    %v154 = vld [vmem:[%s153] sm:$0xff]
    %v155 = vld [vmem:[%s153 + $0x8] sm:$0xff]
    %v156 = vld [vmem:[%s153 + $0x10] sm:$0xff]
    %v157 = vld [vmem:[%s153 + $0x18] sm:$0xff]
    %v158 = vld [vmem:[%s153 + $0x20] sm:$0xff]
    %v159 = vld [vmem:[%s153 + $0x28] sm:$0xff]
    %v160 = vld [vmem:[%s153 + $0x30] sm:$0xff]
    %v161 = vld [vmem:[%s153 + $0x38] sm:$0xff]
    %v162 = vld [vmem:[%s7] sm:$0x1]
    %v163 = vlaneseq
    %v164 = vand.u32 %v163, 127
    %v165 = vld [vmem:[%s0] sm:$0xff]
    %v166 = vld [vmem:[%s0 + $0x8] sm:$0xff]
    %v167 = vld [vmem:[%s0 + $0x10] sm:$0xff]
    %v168 = vld [vmem:[%s0 + $0x18] sm:$0xff]
    %v169 = vld [vmem:[%s0 + $0x20] sm:$0xff]
    %v170 = vld [vmem:[%s0 + $0x28] sm:$0xff]
    %v171 = vld [vmem:[%s0 + $0x30] sm:$0xff]
    %v172 = vld [vmem:[%s0 + $0x38] sm:$0xff]
    %v173 = vld [vmem:[%s0 + $0x40] sm:$0xff]
    %v174 = vld [vmem:[%s0 + $0x48] sm:$0xff]
    %v175 = vld [vmem:[%s0 + $0x50] sm:$0xff]
    %v176 = vld [vmem:[%s0 + $0x58] sm:$0xff]
    %v177 = vld [vmem:[%s0 + $0x60] sm:$0xff]
    %v178 = vld [vmem:[%s0 + $0x68] sm:$0xff]
    %v179 = vld [vmem:[%s0 + $0x70] sm:$0xff]
    %v180 = vld [vmem:[%s0 + $0x78] sm:$0xff]
    %v181 = vld [vmem:[%s0 + $0x80] sm:$0xff]
    %v182 = vld [vmem:[%s0 + $0x88] sm:$0xff]
    %v183 = vld [vmem:[%s0 + $0x90] sm:$0xff]
    %v184 = vld [vmem:[%s0 + $0x98] sm:$0xff]
    %v185 = vld [vmem:[%s0 + $0xa0] sm:$0xff]
    %v186 = vld [vmem:[%s0 + $0xa8] sm:$0xff]
    %v187 = vld [vmem:[%s0 + $0xb0] sm:$0xff]
    %v188 = vld [vmem:[%s0 + $0xb8] sm:$0xff]
    %v189 = vld [vmem:[%s0 + $0xc0] sm:$0xff]
    %v190 = vld [vmem:[%s0 + $0xc8] sm:$0xff]
    %v191 = vld [vmem:[%s0 + $0xd0] sm:$0xff]
    %v192 = vld [vmem:[%s0 + $0xd8] sm:$0xff]
    %v193 = vld [vmem:[%s0 + $0xe0] sm:$0xff]
    %v194 = vld [vmem:[%s0 + $0xe8] sm:$0xff]
    %v195 = vld [vmem:[%s0 + $0xf0] sm:$0xff]
    %v196 = vld [vmem:[%s0 + $0xf8] sm:$0xff]
    %v197 = vld [vmem:[%s0 + $0x100] sm:$0xff]
    %v198 = vld [vmem:[%s0 + $0x108] sm:$0xff]
    %v199 = vld [vmem:[%s0 + $0x110] sm:$0xff]
    %v200 = vld [vmem:[%s0 + $0x118] sm:$0xff]
    %v201 = vld [vmem:[%s0 + $0x120] sm:$0x77]
    %v202 = vld [vmem:[%s0 + $0x128] sm:$0x77]
    %v203 = vld [vmem:[%s0 + $0x130] sm:$0x77]
    %205 = vset.pattern.permute.xlu0 0
    %206 = vperm.xlu0 %205, %v35
    %v207 = vpop.permute.xlu0 %206
    %210 = vset.pattern.permute.xlu0 0
    %211 = vperm.xlu0 %210, %v36
    %v212 = vpop.permute.xlu0 %211
    %215 = vset.pattern.permute.xlu0 0
    %216 = vperm.xlu0 %215, %v37
    %v217 = vpop.permute.xlu0 %216
    %220 = vset.pattern.permute.xlu0 0
    %221 = vperm.xlu0 %220, %v38
    %v222 = vpop.permute.xlu0 %221
    %v228 = vunpack.c.l.b16 %v31
    %v229 = vunpack.c.l.b16 %v32
    %v230 = vunpack.c.l.b16 %v33
    %v231 = vunpack.c.l.b16 %v34
    %v232 = vpack.c.b16 %v229, %v228
    %v233 = vpack.c.b16 %v231, %v230
    %v273 = vunpack.c.l.b16 %v165
    %v274 = vunpack.c.h.b16 %v165
    %v275 = vunpack.c.l.b16 %v166
    %v276 = vunpack.c.h.b16 %v166
    %v277 = vunpack.c.l.b16 %v167
    %v278 = vunpack.c.h.b16 %v167
    %v279 = vunpack.c.l.b16 %v168
    %v280 = vunpack.c.h.b16 %v168
    %v281 = vunpack.c.l.b16 %v169
    %v282 = vunpack.c.h.b16 %v169
    %v283 = vunpack.c.l.b16 %v170
    %v284 = vunpack.c.h.b16 %v170
    %v285 = vunpack.c.l.b16 %v171
    %v286 = vunpack.c.h.b16 %v171
    %v287 = vunpack.c.l.b16 %v172
    %v288 = vunpack.c.h.b16 %v172
    %v289 = vunpack.c.l.b16 %v173
    %v290 = vunpack.c.h.b16 %v173
    %v291 = vunpack.c.l.b16 %v174
    %v292 = vunpack.c.h.b16 %v174
    %v293 = vunpack.c.l.b16 %v175
    %v294 = vunpack.c.h.b16 %v175
    %v295 = vunpack.c.l.b16 %v176
    %v296 = vunpack.c.h.b16 %v176
    %v297 = vunpack.c.l.b16 %v177
    %v298 = vunpack.c.h.b16 %v177
    %v299 = vunpack.c.l.b16 %v178
    %v300 = vunpack.c.h.b16 %v178
    %v301 = vunpack.c.l.b16 %v179
    %v302 = vunpack.c.h.b16 %v179
    %v303 = vunpack.c.l.b16 %v180
    %v304 = vunpack.c.h.b16 %v180
    %v305 = vunpack.c.l.b16 %v181
    %v306 = vunpack.c.h.b16 %v181
    %v307 = vunpack.c.l.b16 %v182
    %v308 = vunpack.c.h.b16 %v182
    %v309 = vunpack.c.l.b16 %v183
    %v310 = vunpack.c.h.b16 %v183
    %v311 = vunpack.c.l.b16 %v184
    %v312 = vunpack.c.h.b16 %v184
    %v313 = vunpack.c.l.b16 %v185
    %v314 = vunpack.c.h.b16 %v185
    %v315 = vunpack.c.l.b16 %v186
    %v316 = vunpack.c.h.b16 %v186
    %v317 = vunpack.c.l.b16 %v187
    %v318 = vunpack.c.h.b16 %v187
    %v319 = vunpack.c.l.b16 %v188
    %v320 = vunpack.c.h.b16 %v188
    %v321 = vunpack.c.l.b16 %v189
    %v322 = vunpack.c.h.b16 %v189
    %v323 = vunpack.c.l.b16 %v190
    %v324 = vunpack.c.h.b16 %v190
    %v325 = vunpack.c.l.b16 %v191
    %v326 = vunpack.c.h.b16 %v191
    %v327 = vunpack.c.l.b16 %v192
    %v328 = vunpack.c.h.b16 %v192
    %v329 = vunpack.c.l.b16 %v193
    %v330 = vunpack.c.h.b16 %v193
    %v331 = vunpack.c.l.b16 %v194
    %v332 = vunpack.c.h.b16 %v194
    %v333 = vunpack.c.l.b16 %v195
    %v334 = vunpack.c.h.b16 %v195
    %v335 = vunpack.c.l.b16 %v196
    %v336 = vunpack.c.h.b16 %v196
    %v337 = vunpack.c.l.b16 %v197
    %v338 = vunpack.c.h.b16 %v197
    %v339 = vunpack.c.l.b16 %v198
    %v340 = vunpack.c.h.b16 %v198
    %v341 = vunpack.c.l.b16 %v199
    %v342 = vunpack.c.h.b16 %v199
    %v343 = vunpack.c.l.b16 %v200
    %v344 = vunpack.c.h.b16 %v200
    %v345 = vunpack.c.l.b16 %v201
    %v346 = vunpack.c.h.b16 %v201
    %v347 = vunpack.c.l.b16 %v202
    %v348 = vunpack.c.h.b16 %v202
    %v349 = vunpack.c.l.b16 %v203
    %v350 = vunpack.c.h.b16 %v203
    %v351 = vpack.c.b16 %v279, %v273
    %v352 = vpack.c.b16 %v280, %v274
    %v353 = vpack.c.b16 %v281, %v275
    %v354 = vpack.c.b16 %v282, %v276
    %v355 = vpack.c.b16 %v283, %v277
    %v356 = vpack.c.b16 %v284, %v278
    %v357 = vpack.c.b16 %v291, %v285
    %v358 = vpack.c.b16 %v292, %v286
    %v359 = vpack.c.b16 %v293, %v287
    %v360 = vpack.c.b16 %v294, %v288
    %v361 = vpack.c.b16 %v295, %v289
    %v362 = vpack.c.b16 %v296, %v290
    %v363 = vpack.c.b16 %v303, %v297
    %v364 = vpack.c.b16 %v304, %v298
    %v365 = vpack.c.b16 %v305, %v299
    %v366 = vpack.c.b16 %v306, %v300
    %v367 = vpack.c.b16 %v307, %v301
    %v368 = vpack.c.b16 %v308, %v302
    %v369 = vpack.c.b16 %v315, %v309
    %v370 = vpack.c.b16 %v316, %v310
    %v371 = vpack.c.b16 %v317, %v311
    %v372 = vpack.c.b16 %v318, %v312
    %v373 = vpack.c.b16 %v319, %v313
    %v374 = vpack.c.b16 %v320, %v314
    %v375 = vpack.c.b16 %v327, %v321
    %v376 = vpack.c.b16 %v328, %v322
    %v377 = vpack.c.b16 %v329, %v323
    %v378 = vpack.c.b16 %v330, %v324
    %v379 = vpack.c.b16 %v331, %v325
    %v380 = vpack.c.b16 %v332, %v326
    %v381 = vpack.c.b16 %v339, %v333
    %v382 = vpack.c.b16 %v340, %v334
    %v383 = vpack.c.b16 %v341, %v335
    %v384 = vpack.c.b16 %v342, %v336
    %v385 = vpack.c.b16 %v343, %v337
    %v386 = vpack.c.b16 %v344, %v338
    %v387 = vpack.c.b16 %v345, %v345
    %v388 = vpack.c.b16 %v346, %v346
    %v389 = vpack.c.b16 %v347, %v347
    %v390 = vpack.c.b16 %v348, %v348
    %v391 = vpack.c.b16 %v349, %v349
    %v392 = vpack.c.b16 %v350, %v350
    %vm429 = vcmask 834560
    %v431 = vsel %vm429, %v232, 0
    %v434 = vsel %vm429, %v233, 0
    %vm436 = vcmask 1042432
    %v438 = vsel %vm436, %v387, 0
    %v441 = vsel %vm436, %v388, 0
    %v444 = vsel %vm436, %v389, 0
    %v447 = vsel %vm436, %v390, 0
    %v450 = vsel %vm436, %v391, 0
    %v453 = vsel %vm436, %v392, 0
    %455 = vmatprep.subr.bf16.mxu0 0
    %456 = vmatpush1.bf16.msra.mxu0 0
    %457 = vmatprep.subr.bf16.mxu0 %v441
    %458 = vmatpush1.bf16.msra.mxu0 %v438
    %459 = vmatprep.subr.bf16.mxu0 %v382
    %460 = vmatpush1.bf16.msra.mxu0 %v381
    %461 = vmatprep.subr.bf16.mxu0 %v376
    %462 = vmatpush1.bf16.msra.mxu0 %v375
    %463 = vmatprep.subr.bf16.mxu0 %v370
    %464 = vmatpush1.bf16.msra.mxu0 %v369
    %465 = vmatprep.subr.bf16.mxu0 %v364
    %466 = vmatpush1.bf16.msra.mxu0 %v363
    %467 = vmatprep.subr.bf16.mxu0 %v358
    %468 = vmatpush1.bf16.msra.mxu0 %v357
    %469 = vmatprep.subr.bf16.mxu0 %v352
    %470 = vmatpush1.bf16.msra.mxu0 %v351
    %471 = vmatprep.subr.bf16.mxu0 0
    %472 = vmatpush2.bf16.msra.mxu0 0
    %473 = vmatprep.subr.bf16.mxu0 0
    %474 = vmatpush2.bf16.msra.mxu0 0
    %475 = vmatprep.subr.bf16.mxu0 0
    %476 = vmatpush2.bf16.msra.mxu0 0
    %477 = vmatprep.subr.bf16.mxu0 0
    %478 = vmatpush2.bf16.msra.mxu0 0
    %479 = vmatprep.subr.bf16.mxu0 0
    %480 = vmatpush2.bf16.msra.mxu0 0
    %481 = vmatprep.subr.bf16.mxu0 0
    %482 = vmatpush2.bf16.msra.mxu0 0
    %483 = vmatprep.subr.bf16.mxu0 0
    %484 = vmatpush2.bf16.msra.mxu0 0
    %485 = vmatprep.subr.bf16.mxu0 0
    %486 = vmatpush2.bf16.msra.mxu0 0
    %487 = vmatprep.mubr.bf16.mxu0 0
    %488 = vmatmul.mubr.bf16.gmra.mxu0 %v431
    %v489 = vpop.f32.mrf.mxu0
    %v490 = vadd.f32 %v207, %v489
    %v491 = vpop.f32.mrf.mxu0
    %v492 = vadd.f32 %v207, %v491
    %v493 = vpop.f32.mrf.mxu0
    %v494 = vadd.f32 %v212, %v493
    %v495 = vpop.f32.mrf.mxu0
    %v496 = vadd.f32 %v212, %v495
    %497 = vmatprep.mubr.bf16.mxu0 0
    %498 = vmatmul.mubr.bf16.gmra.mxu0 %v434
    %v499 = vpop.f32.mrf.mxu0
    %v500 = vadd.f32 %v217, %v499
    %v501 = vpop.f32.mrf.mxu0
    %v502 = vadd.f32 %v217, %v501
    %v503 = vpop.f32.mrf.mxu0
    %v504 = vadd.f32 %v222, %v503
    %v505 = vpop.f32.mrf.mxu0
    %v506 = vadd.f32 %v222, %v505
    %507 = vdwg.mxu0
    %508 = vmatprep.subr.bf16.mxu0 0
    %509 = vmatpush1.bf16.msra.mxu0 0
    %510 = vmatprep.subr.bf16.mxu0 %v447
    %511 = vmatpush1.bf16.msra.mxu0 %v444
    %512 = vmatprep.subr.bf16.mxu0 %v384
    %513 = vmatpush1.bf16.msra.mxu0 %v383
    %514 = vmatprep.subr.bf16.mxu0 %v378
    %515 = vmatpush1.bf16.msra.mxu0 %v377
    %516 = vmatprep.subr.bf16.mxu0 %v372
    %517 = vmatpush1.bf16.msra.mxu0 %v371
    %518 = vmatprep.subr.bf16.mxu0 %v366
    %519 = vmatpush1.bf16.msra.mxu0 %v365
    %520 = vmatprep.subr.bf16.mxu0 %v360
    %521 = vmatpush1.bf16.msra.mxu0 %v359
    %522 = vmatprep.subr.bf16.mxu0 %v354
    %523 = vmatpush1.bf16.msra.mxu0 %v353
    %524 = vmatprep.subr.bf16.mxu0 0
    %525 = vmatpush2.bf16.msra.mxu0 0
    %526 = vmatprep.subr.bf16.mxu0 0
    %527 = vmatpush2.bf16.msra.mxu0 0
    %528 = vmatprep.subr.bf16.mxu0 0
    %529 = vmatpush2.bf16.msra.mxu0 0
    %530 = vmatprep.subr.bf16.mxu0 0
    %531 = vmatpush2.bf16.msra.mxu0 0
    %532 = vmatprep.subr.bf16.mxu0 0
    %533 = vmatpush2.bf16.msra.mxu0 0
    %534 = vmatprep.subr.bf16.mxu0 0
    %535 = vmatpush2.bf16.msra.mxu0 0
    %536 = vmatprep.subr.bf16.mxu0 0
    %537 = vmatpush2.bf16.msra.mxu0 0
    %538 = vmatprep.subr.bf16.mxu0 0
    %539 = vmatpush2.bf16.msra.mxu0 0
    %540 = vmatprep.mubr.bf16.mxu0 0
    %541 = vmatmul.mubr.bf16.gmra.mxu0 %v431
    %v542 = vpop.f32.mrf.mxu0
    %v543 = vadd.f32 %v207, %v542
    %v544 = vpop.f32.mrf.mxu0
    %v545 = vadd.f32 %v207, %v544
    %v546 = vpop.f32.mrf.mxu0
    %v547 = vadd.f32 %v212, %v546
    %v548 = vpop.f32.mrf.mxu0
    %v549 = vadd.f32 %v212, %v548
    %550 = vmatprep.mubr.bf16.mxu0 0
    %551 = vmatmul.mubr.bf16.gmra.mxu0 %v434
    %v552 = vpop.f32.mrf.mxu0
    %v553 = vadd.f32 %v217, %v552
    %v554 = vpop.f32.mrf.mxu0
    %v555 = vadd.f32 %v217, %v554
    %v556 = vpop.f32.mrf.mxu0
    %v557 = vadd.f32 %v222, %v556
    %v558 = vpop.f32.mrf.mxu0
    %v559 = vadd.f32 %v222, %v558
    %560 = vdwg.mxu0
    %561 = vmatprep.subr.bf16.mxu0 0
    %562 = vmatpush1.bf16.msra.mxu0 0
    %563 = vmatprep.subr.bf16.mxu0 %v453
    %564 = vmatpush1.bf16.msra.mxu0 %v450
    %565 = vmatprep.subr.bf16.mxu0 %v386
    %566 = vmatpush1.bf16.msra.mxu0 %v385
    %567 = vmatprep.subr.bf16.mxu0 %v380
    %568 = vmatpush1.bf16.msra.mxu0 %v379
    %569 = vmatprep.subr.bf16.mxu0 %v374
    %570 = vmatpush1.bf16.msra.mxu0 %v373
    %571 = vmatprep.subr.bf16.mxu0 %v368
    %572 = vmatpush1.bf16.msra.mxu0 %v367
    %573 = vmatprep.subr.bf16.mxu0 %v362
    %574 = vmatpush1.bf16.msra.mxu0 %v361
    %575 = vmatprep.subr.bf16.mxu0 %v356
    %576 = vmatpush1.bf16.msra.mxu0 %v355
    %577 = vmatprep.subr.bf16.mxu0 0
    %578 = vmatpush2.bf16.msra.mxu0 0
    %579 = vmatprep.subr.bf16.mxu0 0
    %580 = vmatpush2.bf16.msra.mxu0 0
    %581 = vmatprep.subr.bf16.mxu0 0
    %582 = vmatpush2.bf16.msra.mxu0 0
    %583 = vmatprep.subr.bf16.mxu0 0
    %584 = vmatpush2.bf16.msra.mxu0 0
    %585 = vmatprep.subr.bf16.mxu0 0
    %586 = vmatpush2.bf16.msra.mxu0 0
    %587 = vmatprep.subr.bf16.mxu0 0
    %588 = vmatpush2.bf16.msra.mxu0 0
    %589 = vmatprep.subr.bf16.mxu0 0
    %590 = vmatpush2.bf16.msra.mxu0 0
    %591 = vmatprep.subr.bf16.mxu0 0
    %592 = vmatpush2.bf16.msra.mxu0 0
    %593 = vmatprep.mubr.bf16.mxu0 0
    %594 = vmatmul.mubr.bf16.gmra.mxu0 %v431
    %v595 = vpop.f32.mrf.mxu0
    %v596 = vadd.f32 %v207, %v595
    %v597 = vpop.f32.mrf.mxu0
    %v598 = vadd.f32 %v207, %v597
    %v599 = vpop.f32.mrf.mxu0
    %v600 = vadd.f32 %v212, %v599
    %v601 = vpop.f32.mrf.mxu0
    %v602 = vadd.f32 %v212, %v601
    %603 = vmatprep.mubr.bf16.mxu0 0
    %604 = vmatmul.mubr.bf16.gmra.mxu0 %v434
    %v605 = vpop.f32.mrf.mxu0
    %v606 = vadd.f32 %v217, %v605
    %v607 = vpop.f32.mrf.mxu0
    %v608 = vadd.f32 %v217, %v607
    %v609 = vpop.f32.mrf.mxu0
    %v610 = vadd.f32 %v222, %v609
    %v611 = vpop.f32.mrf.mxu0
    %v612 = vadd.f32 %v222, %v611
    %613 = vdwg.mxu0
    %vm614 = vcmp.gt.f32.partialorder %v490, 0.0
    %vm615 = vcmp.gt.f32.partialorder %v492, 0.0
    %vm616 = vcmp.gt.f32.partialorder %v543, 0.0
    %vm617 = vcmp.gt.f32.partialorder %v545, 0.0
    %vm618 = vcmp.gt.f32.partialorder %v596, 0.0
    %vm619 = vcmp.gt.f32.partialorder %v598, 0.0
    %vm620 = vcmp.gt.f32.partialorder %v494, 0.0
    %vm621 = vcmp.gt.f32.partialorder %v496, 0.0
    %vm622 = vcmp.gt.f32.partialorder %v547, 0.0
    %vm623 = vcmp.gt.f32.partialorder %v549, 0.0
    %vm624 = vcmp.gt.f32.partialorder %v600, 0.0
    %vm625 = vcmp.gt.f32.partialorder %v602, 0.0
    %vm626 = vcmp.gt.f32.partialorder %v500, 0.0
    %vm627 = vcmp.gt.f32.partialorder %v502, 0.0
    %vm628 = vcmp.gt.f32.partialorder %v553, 0.0
    %vm629 = vcmp.gt.f32.partialorder %v555, 0.0
    %vm630 = vcmp.gt.f32.partialorder %v606, 0.0
    %vm631 = vcmp.gt.f32.partialorder %v608, 0.0
    %vm632 = vcmp.gt.f32.partialorder %v504, 0.0
    %vm633 = vcmp.gt.f32.partialorder %v506, 0.0
    %vm634 = vcmp.gt.f32.partialorder %v557, 0.0
    %vm635 = vcmp.gt.f32.partialorder %v559, 0.0
    %vm636 = vcmp.gt.f32.partialorder %v610, 0.0
    %vm637 = vcmp.gt.f32.partialorder %v612, 0.0
    %v638 = vmin.f32 %v490, 0.0
    %v639 = vmin.f32 %v492, 0.0
    %v640 = vmin.f32 %v543, 0.0
    %v641 = vmin.f32 %v545, 0.0
    %v642 = vmin.f32 %v596, 0.0
    %v643 = vmin.f32 %v598, 0.0
    %v644 = vmin.f32 %v494, 0.0
    %v645 = vmin.f32 %v496, 0.0
    %v646 = vmin.f32 %v547, 0.0
    %v647 = vmin.f32 %v549, 0.0
    %v648 = vmin.f32 %v600, 0.0
    %v649 = vmin.f32 %v602, 0.0
    %v650 = vmin.f32 %v500, 0.0
    %v651 = vmin.f32 %v502, 0.0
    %v652 = vmin.f32 %v553, 0.0
    %v653 = vmin.f32 %v555, 0.0
    %v654 = vmin.f32 %v606, 0.0
    %v655 = vmin.f32 %v608, 0.0
    %v656 = vmin.f32 %v504, 0.0
    %v657 = vmin.f32 %v506, 0.0
    %v658 = vmin.f32 %v557, 0.0
    %v659 = vmin.f32 %v559, 0.0
    %v660 = vmin.f32 %v610, 0.0
    %v661 = vmin.f32 %v612, 0.0
    %v662 = vmul.f32 %v638, 1.442695
    %v663 = vpow.pop %v662
    %v664 = vmul.f32 %v639, 1.442695
    %v665 = vpow.pop %v664
    %v666 = vmul.f32 %v640, 1.442695
    %v667 = vpow.pop %v666
    %v668 = vmul.f32 %v641, 1.442695
    %v669 = vpow.pop %v668
    %v670 = vmul.f32 %v642, 1.442695
    %v671 = vpow.pop %v670
    %v672 = vmul.f32 %v643, 1.442695
    %v673 = vpow.pop %v672
    %v674 = vmul.f32 %v644, 1.442695
    %v675 = vpow.pop %v674
    %v676 = vmul.f32 %v645, 1.442695
    %v677 = vpow.pop %v676
    %v678 = vmul.f32 %v646, 1.442695
    %v679 = vpow.pop %v678
    %v680 = vmul.f32 %v647, 1.442695
    %v681 = vpow.pop %v680
    %v682 = vmul.f32 %v648, 1.442695
    %v683 = vpow.pop %v682
    %v684 = vmul.f32 %v649, 1.442695
    %v685 = vpow.pop %v684
    %v686 = vmul.f32 %v650, 1.442695
    %v687 = vpow.pop %v686
    %v688 = vmul.f32 %v651, 1.442695
    %v689 = vpow.pop %v688
    %v690 = vmul.f32 %v652, 1.442695
    %v691 = vpow.pop %v690
    %v692 = vmul.f32 %v653, 1.442695
    %v693 = vpow.pop %v692
    %v694 = vmul.f32 %v654, 1.442695
    %v695 = vpow.pop %v694
    %v696 = vmul.f32 %v655, 1.442695
    %v697 = vpow.pop %v696
    %v698 = vmul.f32 %v656, 1.442695
    %v699 = vpow.pop %v698
    %v700 = vmul.f32 %v657, 1.442695
    %v701 = vpow.pop %v700
    %v702 = vmul.f32 %v658, 1.442695
    %v703 = vpow.pop %v702
    %v704 = vmul.f32 %v659, 1.442695
    %v705 = vpow.pop %v704
    %v706 = vmul.f32 %v660, 1.442695
    %v707 = vpow.pop %v706
    %v708 = vmul.f32 %v661, 1.442695
    %v709 = vpow.pop %v708
    %v710 = vsub.f32 %v663, 1.0
    %v711 = vsub.f32 %v665, 1.0
    %v712 = vsub.f32 %v667, 1.0
    %v713 = vsub.f32 %v669, 1.0
    %v714 = vsub.f32 %v671, 1.0
    %v715 = vsub.f32 %v673, 1.0
    %v716 = vsub.f32 %v675, 1.0
    %v717 = vsub.f32 %v677, 1.0
    %v718 = vsub.f32 %v679, 1.0
    %v719 = vsub.f32 %v681, 1.0
    %v720 = vsub.f32 %v683, 1.0
    %v721 = vsub.f32 %v685, 1.0
    %v722 = vsub.f32 %v687, 1.0
    %v723 = vsub.f32 %v689, 1.0
    %v724 = vsub.f32 %v691, 1.0
    %v725 = vsub.f32 %v693, 1.0
    %v726 = vsub.f32 %v695, 1.0
    %v727 = vsub.f32 %v697, 1.0
    %v728 = vsub.f32 %v699, 1.0
    %v729 = vsub.f32 %v701, 1.0
    %v730 = vsub.f32 %v703, 1.0
    %v731 = vsub.f32 %v705, 1.0
    %v732 = vsub.f32 %v707, 1.0
    %v733 = vsub.f32 %v709, 1.0
    %v734 = vsel %vm614, %v490, %v710
    %v735 = vsel %vm615, %v492, %v711
    %v736 = vsel %vm616, %v543, %v712
    %v737 = vsel %vm617, %v545, %v713
    %v738 = vsel %vm618, %v596, %v714
    %v739 = vsel %vm619, %v598, %v715
    %v740 = vsel %vm620, %v494, %v716
    %v741 = vsel %vm621, %v496, %v717
    %v742 = vsel %vm622, %v547, %v718
    %v743 = vsel %vm623, %v549, %v719
    %v744 = vsel %vm624, %v600, %v720
    %v745 = vsel %vm625, %v602, %v721
    %v746 = vsel %vm626, %v500, %v722
    %v747 = vsel %vm627, %v502, %v723
    %v748 = vsel %vm628, %v553, %v724
    %v749 = vsel %vm629, %v555, %v725
    %v750 = vsel %vm630, %v606, %v726
    %v751 = vsel %vm631, %v608, %v727
    %v752 = vsel %vm632, %v504, %v728
    %v753 = vsel %vm633, %v506, %v729
    %v754 = vsel %vm634, %v557, %v730
    %v755 = vsel %vm635, %v559, %v731
    %v756 = vsel %vm636, %v610, %v732
    %v757 = vsel %vm637, %v612, %v733
    %v758 = vpack.c.bf16 %v740, %v734
    %v759 = vpack.c.bf16 %v741, %v735
    %v760 = vpack.c.bf16 %v742, %v736
    %v761 = vpack.c.bf16 %v743, %v737
    %v762 = vpack.c.bf16 %v744, %v738
    %v763 = vpack.c.bf16 %v745, %v739
    %v764 = vpack.c.bf16 %v752, %v746
    %v765 = vpack.c.bf16 %v753, %v747
    %v766 = vpack.c.bf16 %v754, %v748
    %v767 = vpack.c.bf16 %v755, %v749
    %v768 = vpack.c.bf16 %v756, %v750
    %v769 = vpack.c.bf16 %v757, %v751
    %v864 = vunpack.c.l.b16 %v39
    %v865 = vunpack.c.h.b16 %v39
    %v866 = vunpack.c.l.b16 %v40
    %v867 = vunpack.c.h.b16 %v40
    %v868 = vunpack.c.l.b16 %v41
    %v869 = vunpack.c.h.b16 %v41
    %v870 = vunpack.c.l.b16 %v42
    %v871 = vunpack.c.h.b16 %v42
    %v872 = vunpack.c.l.b16 %v43
    %v873 = vunpack.c.h.b16 %v43
    %v874 = vunpack.c.l.b16 %v44
    %v875 = vunpack.c.h.b16 %v44
    %v876 = vunpack.c.l.b16 %v45
    %v877 = vunpack.c.h.b16 %v45
    %v878 = vunpack.c.l.b16 %v46
    %v879 = vunpack.c.h.b16 %v46
    %v880 = vunpack.c.l.b16 %v47
    %v881 = vunpack.c.h.b16 %v47
    %v882 = vunpack.c.l.b16 %v48
    %v883 = vunpack.c.h.b16 %v48
    %v884 = vunpack.c.l.b16 %v49
    %v885 = vunpack.c.h.b16 %v49
    %v886 = vunpack.c.l.b16 %v50
    %v887 = vunpack.c.h.b16 %v50
    %v888 = vunpack.c.l.b16 %v51
    %v889 = vunpack.c.h.b16 %v51
    %v890 = vunpack.c.l.b16 %v52
    %v891 = vunpack.c.h.b16 %v52
    %v892 = vunpack.c.l.b16 %v53
    %v893 = vunpack.c.h.b16 %v53
    %v894 = vunpack.c.l.b16 %v54
    %v895 = vunpack.c.h.b16 %v54
    %v896 = vunpack.c.l.b16 %v55
    %v897 = vunpack.c.h.b16 %v55
    %v898 = vunpack.c.l.b16 %v56
    %v899 = vunpack.c.h.b16 %v56
    %v900 = vunpack.c.l.b16 %v57
    %v901 = vunpack.c.h.b16 %v57
    %v902 = vunpack.c.l.b16 %v58
    %v903 = vunpack.c.h.b16 %v58
    %v904 = vunpack.c.l.b16 %v59
    %v905 = vunpack.c.h.b16 %v59
    %v906 = vunpack.c.l.b16 %v60
    %v907 = vunpack.c.h.b16 %v60
    %v908 = vunpack.c.l.b16 %v61
    %v909 = vunpack.c.h.b16 %v61
    %v910 = vunpack.c.l.b16 %v62
    %v911 = vunpack.c.h.b16 %v62
    %v912 = vunpack.c.l.b16 %v63
    %v913 = vunpack.c.h.b16 %v63
    %v914 = vunpack.c.l.b16 %v64
    %v915 = vunpack.c.h.b16 %v64
    %v916 = vunpack.c.l.b16 %v65
    %v917 = vunpack.c.h.b16 %v65
    %v918 = vunpack.c.l.b16 %v66
    %v919 = vunpack.c.h.b16 %v66
    %v920 = vunpack.c.l.b16 %v67
    %v921 = vunpack.c.h.b16 %v67
    %v922 = vunpack.c.l.b16 %v68
    %v923 = vunpack.c.h.b16 %v68
    %v924 = vunpack.c.l.b16 %v69
    %v925 = vunpack.c.h.b16 %v69
    %v926 = vunpack.c.l.b16 %v70
    %v927 = vunpack.c.h.b16 %v70
    %v928 = vunpack.c.l.b16 %v71
    %v929 = vunpack.c.h.b16 %v71
    %v930 = vunpack.c.l.b16 %v72
    %v931 = vunpack.c.h.b16 %v72
    %v932 = vunpack.c.l.b16 %v73
    %v933 = vunpack.c.h.b16 %v73
    %v934 = vunpack.c.l.b16 %v74
    %v935 = vunpack.c.h.b16 %v74
    %v936 = vunpack.c.l.b16 %v75
    %v937 = vunpack.c.h.b16 %v75
    %v938 = vunpack.c.l.b16 %v76
    %v939 = vunpack.c.h.b16 %v76
    %v940 = vunpack.c.l.b16 %v77
    %v941 = vunpack.c.h.b16 %v77
    %v942 = vunpack.c.l.b16 %v78
    %v943 = vunpack.c.h.b16 %v78
    %v944 = vunpack.c.l.b16 %v79
    %v945 = vunpack.c.h.b16 %v79
    %v946 = vunpack.c.l.b16 %v80
    %v947 = vunpack.c.h.b16 %v80
    %v948 = vunpack.c.l.b16 %v81
    %v949 = vunpack.c.h.b16 %v81
    %v950 = vunpack.c.l.b16 %v82
    %v951 = vunpack.c.h.b16 %v82
    %v952 = vunpack.c.l.b16 %v83
    %v953 = vunpack.c.h.b16 %v83
    %v954 = vunpack.c.l.b16 %v84
    %v955 = vunpack.c.h.b16 %v84
    %v956 = vunpack.c.l.b16 %v85
    %v957 = vunpack.c.h.b16 %v85
    %v958 = vunpack.c.l.b16 %v86
    %v959 = vunpack.c.h.b16 %v86
    %v960 = vunpack.c.l.b16 %v87
    %v961 = vunpack.c.h.b16 %v87
    %v962 = vunpack.c.l.b16 %v88
    %v963 = vunpack.c.h.b16 %v88
    %v964 = vunpack.c.l.b16 %v89
    %v965 = vunpack.c.h.b16 %v89
    %v966 = vunpack.c.l.b16 %v90
    %v967 = vunpack.c.h.b16 %v90
    %v968 = vunpack.c.l.b16 %v91
    %v969 = vunpack.c.h.b16 %v91
    %v970 = vunpack.c.l.b16 %v92
    %v971 = vunpack.c.h.b16 %v92
    %v972 = vunpack.c.l.b16 %v93
    %v973 = vunpack.c.h.b16 %v93
    %v974 = vunpack.c.l.b16 %v94
    %v975 = vunpack.c.h.b16 %v94
    %v976 = vunpack.c.l.b16 %v95
    %v977 = vunpack.c.h.b16 %v95
    %v978 = vunpack.c.l.b16 %v96
    %v979 = vunpack.c.h.b16 %v96
    %v980 = vunpack.c.l.b16 %v97
    %v981 = vunpack.c.h.b16 %v97
    %v982 = vunpack.c.l.b16 %v98
    %v983 = vunpack.c.h.b16 %v98
    %v984 = vunpack.c.l.b16 %v99
    %v985 = vunpack.c.h.b16 %v99
    %v986 = vunpack.c.l.b16 %v100
    %v987 = vunpack.c.h.b16 %v100
    %v988 = vunpack.c.l.b16 %v101
    %v989 = vunpack.c.h.b16 %v101
    %v990 = vunpack.c.l.b16 %v102
    %v991 = vunpack.c.h.b16 %v102
    %v992 = vunpack.c.l.b16 %v103
    %v993 = vunpack.c.h.b16 %v103
    %v994 = vunpack.c.l.b16 %v104
    %v995 = vunpack.c.h.b16 %v104
    %v996 = vunpack.c.l.b16 %v105
    %v997 = vunpack.c.h.b16 %v105
    %v998 = vunpack.c.l.b16 %v106
    %v999 = vunpack.c.h.b16 %v106
    %v1000 = vunpack.c.l.b16 %v107
    %v1001 = vunpack.c.h.b16 %v107
    %v1002 = vunpack.c.l.b16 %v108
    %v1003 = vunpack.c.h.b16 %v108
    %v1004 = vunpack.c.l.b16 %v109
    %v1005 = vunpack.c.h.b16 %v109
    %v1006 = vunpack.c.l.b16 %v110
    %v1007 = vunpack.c.h.b16 %v110
    %v1008 = vunpack.c.l.b16 %v111
    %v1009 = vunpack.c.h.b16 %v111
    %v1010 = vunpack.c.l.b16 %v112
    %v1011 = vunpack.c.h.b16 %v112
    %v1012 = vunpack.c.l.b16 %v113
    %v1013 = vunpack.c.h.b16 %v113
    %v1014 = vunpack.c.l.b16 %v114
    %v1015 = vunpack.c.h.b16 %v114
    %v1016 = vunpack.c.l.b16 %v115
    %v1017 = vunpack.c.h.b16 %v115
    %v1018 = vunpack.c.l.b16 %v116
    %v1019 = vunpack.c.h.b16 %v116
    %v1020 = vunpack.c.l.b16 %v117
    %v1021 = vunpack.c.h.b16 %v117
    %v1022 = vunpack.c.l.b16 %v118
    %v1023 = vunpack.c.h.b16 %v118
    %v1024 = vunpack.c.l.b16 %v119
    %v1025 = vunpack.c.h.b16 %v119
    %v1026 = vunpack.c.l.b16 %v120
    %v1027 = vunpack.c.h.b16 %v120
    %v1028 = vunpack.c.l.b16 %v121
    %v1029 = vunpack.c.h.b16 %v121
    %v1030 = vunpack.c.l.b16 %v122
    %v1031 = vunpack.c.h.b16 %v122
    %v1032 = vunpack.c.l.b16 %v123
    %v1033 = vunpack.c.h.b16 %v123
    %v1034 = vunpack.c.l.b16 %v124
    %v1035 = vunpack.c.h.b16 %v124
    %v1036 = vunpack.c.l.b16 %v125
    %v1037 = vunpack.c.h.b16 %v125
    %v1038 = vunpack.c.l.b16 %v126
    %v1039 = vunpack.c.h.b16 %v126
    %v1040 = vunpack.c.l.b16 %v127
    %v1041 = vunpack.c.h.b16 %v127
    %v1042 = vunpack.c.l.b16 %v128
    %v1043 = vunpack.c.h.b16 %v128
    %v1044 = vunpack.c.l.b16 %v129
    %v1045 = vunpack.c.h.b16 %v129
    %v1046 = vunpack.c.l.b16 %v130
    %v1047 = vunpack.c.h.b16 %v130
    %v1048 = vunpack.c.l.b16 %v131
    %v1049 = vunpack.c.h.b16 %v131
    %v1050 = vunpack.c.l.b16 %v132
    %v1051 = vunpack.c.h.b16 %v132
    %v1052 = vpack.c.b16 %v866, %v864
    %v1053 = vpack.c.b16 %v867, %v865
    %v1054 = vpack.c.b16 %v870, %v868
    %v1055 = vpack.c.b16 %v871, %v869
    %v1056 = vpack.c.b16 %v874, %v872
    %v1057 = vpack.c.b16 %v875, %v873
    %v1058 = vpack.c.b16 %v878, %v876
    %v1059 = vpack.c.b16 %v879, %v877
    %v1060 = vpack.c.b16 %v882, %v880
    %v1061 = vpack.c.b16 %v883, %v881
    %v1062 = vpack.c.b16 %v886, %v884
    %v1063 = vpack.c.b16 %v887, %v885
    %v1064 = vpack.c.b16 %v890, %v888
    %v1065 = vpack.c.b16 %v891, %v889
    %v1066 = vpack.c.b16 %v894, %v892
    %v1067 = vpack.c.b16 %v895, %v893
    %v1068 = vpack.c.b16 %v898, %v896
    %v1069 = vpack.c.b16 %v899, %v897
    %v1070 = vpack.c.b16 %v902, %v900
    %v1071 = vpack.c.b16 %v903, %v901
    %v1072 = vpack.c.b16 %v906, %v904
    %v1073 = vpack.c.b16 %v907, %v905
    %v1074 = vpack.c.b16 %v910, %v908
    %v1075 = vpack.c.b16 %v911, %v909
    %v1076 = vpack.c.b16 %v914, %v912
    %v1077 = vpack.c.b16 %v915, %v913
    %v1078 = vpack.c.b16 %v918, %v916
    %v1079 = vpack.c.b16 %v919, %v917
    %v1080 = vpack.c.b16 %v922, %v920
    %v1081 = vpack.c.b16 %v923, %v921
    %v1082 = vpack.c.b16 %v926, %v924
    %v1083 = vpack.c.b16 %v927, %v925
    %v1084 = vpack.c.b16 %v930, %v928
    %v1085 = vpack.c.b16 %v931, %v929
    %v1086 = vpack.c.b16 %v934, %v932
    %v1087 = vpack.c.b16 %v935, %v933
    %v1088 = vpack.c.b16 %v938, %v936
    %v1089 = vpack.c.b16 %v939, %v937
    %v1090 = vpack.c.b16 %v942, %v940
    %v1091 = vpack.c.b16 %v943, %v941
    %v1092 = vpack.c.b16 %v946, %v944
    %v1093 = vpack.c.b16 %v947, %v945
    %v1094 = vpack.c.b16 %v950, %v948
    %v1095 = vpack.c.b16 %v951, %v949
    %v1096 = vpack.c.b16 %v954, %v952
    %v1097 = vpack.c.b16 %v955, %v953
    %v1098 = vpack.c.b16 %v958, %v956
    %v1099 = vpack.c.b16 %v959, %v957
    %v1100 = vpack.c.b16 %v962, %v960
    %v1101 = vpack.c.b16 %v963, %v961
    %v1102 = vpack.c.b16 %v966, %v964
    %v1103 = vpack.c.b16 %v967, %v965
    %v1104 = vpack.c.b16 %v970, %v968
    %v1105 = vpack.c.b16 %v971, %v969
    %v1106 = vpack.c.b16 %v974, %v972
    %v1107 = vpack.c.b16 %v975, %v973
    %v1108 = vpack.c.b16 %v978, %v976
    %v1109 = vpack.c.b16 %v979, %v977
    %v1110 = vpack.c.b16 %v982, %v980
    %v1111 = vpack.c.b16 %v983, %v981
    %v1112 = vpack.c.b16 %v986, %v984
    %v1113 = vpack.c.b16 %v987, %v985
    %v1114 = vpack.c.b16 %v990, %v988
    %v1115 = vpack.c.b16 %v991, %v989
    %v1116 = vpack.c.b16 %v994, %v992
    %v1117 = vpack.c.b16 %v995, %v993
    %v1118 = vpack.c.b16 %v998, %v996
    %v1119 = vpack.c.b16 %v999, %v997
    %v1120 = vpack.c.b16 %v1002, %v1000
    %v1121 = vpack.c.b16 %v1003, %v1001
    %v1122 = vpack.c.b16 %v1006, %v1004
    %v1123 = vpack.c.b16 %v1007, %v1005
    %v1124 = vpack.c.b16 %v1010, %v1008
    %v1125 = vpack.c.b16 %v1011, %v1009
    %v1126 = vpack.c.b16 %v1014, %v1012
    %v1127 = vpack.c.b16 %v1015, %v1013
    %v1128 = vpack.c.b16 %v1018, %v1016
    %v1129 = vpack.c.b16 %v1019, %v1017
    %v1130 = vpack.c.b16 %v1022, %v1020
    %v1131 = vpack.c.b16 %v1023, %v1021
    %v1132 = vpack.c.b16 %v1026, %v1024
    %v1133 = vpack.c.b16 %v1027, %v1025
    %v1134 = vpack.c.b16 %v1030, %v1028
    %v1135 = vpack.c.b16 %v1031, %v1029
    %v1136 = vpack.c.b16 %v1034, %v1032
    %v1137 = vpack.c.b16 %v1035, %v1033
    %v1138 = vpack.c.b16 %v1038, %v1036
    %v1139 = vpack.c.b16 %v1039, %v1037
    %v1140 = vpack.c.b16 %v1042, %v1040
    %v1141 = vpack.c.b16 %v1043, %v1041
    %v1142 = vpack.c.b16 %v1046, %v1044
    %v1143 = vpack.c.b16 %v1047, %v1045
    %v1144 = vpack.c.b16 %v1050, %v1048
    %v1145 = vpack.c.b16 %v1051, %v1049
    %vm1238 = vcmask 900096
    %v1240 = vsel %vm1238, %v763, 0
    %v1243 = vsel %vm1238, %v769, 0
    %vm1245 = vcmask 1046528
    %v1247 = vsel %vm1245, %v1144, 0
    %v1250 = vsel %vm1245, %v1145, 0
    %1252 = vmatprep.subr.bf16.mxu0 %v1067
    %1253 = vmatpush1.bf16.msra.mxu0 %v1066
    %1254 = vmatprep.subr.bf16.mxu0 %v1065
    %1255 = vmatpush1.bf16.msra.mxu0 %v1064
    %1256 = vmatprep.subr.bf16.mxu0 %v1063
    %1257 = vmatpush1.bf16.msra.mxu0 %v1062
    %1258 = vmatprep.subr.bf16.mxu0 %v1061
    %1259 = vmatpush1.bf16.msra.mxu0 %v1060
    %1260 = vmatprep.subr.bf16.mxu0 %v1059
    %1261 = vmatpush1.bf16.msra.mxu0 %v1058
    %1262 = vmatprep.subr.bf16.mxu0 %v1057
    %1263 = vmatpush1.bf16.msra.mxu0 %v1056
    %1264 = vmatprep.subr.bf16.mxu0 %v1055
    %1265 = vmatpush1.bf16.msra.mxu0 %v1054
    %1266 = vmatprep.subr.bf16.mxu0 %v1053
    %1267 = vmatpush1.bf16.msra.mxu0 %v1052
    %1268 = vmatprep.subr.bf16.mxu0 %v1083
    %1269 = vmatpush2.bf16.msra.mxu0 %v1082
    %1270 = vmatprep.subr.bf16.mxu0 %v1081
    %1271 = vmatpush2.bf16.msra.mxu0 %v1080
    %1272 = vmatprep.subr.bf16.mxu0 %v1079
    %1273 = vmatpush2.bf16.msra.mxu0 %v1078
    %1274 = vmatprep.subr.bf16.mxu0 %v1077
    %1275 = vmatpush2.bf16.msra.mxu0 %v1076
    %1276 = vmatprep.subr.bf16.mxu0 %v1075
    %1277 = vmatpush2.bf16.msra.mxu0 %v1074
    %1278 = vmatprep.subr.bf16.mxu0 %v1073
    %1279 = vmatpush2.bf16.msra.mxu0 %v1072
    %1280 = vmatprep.subr.bf16.mxu0 %v1071
    %1281 = vmatpush2.bf16.msra.mxu0 %v1070
    %1282 = vmatprep.subr.bf16.mxu0 %v1069
    %1283 = vmatpush2.bf16.msra.mxu0 %v1068
    %1284 = vmatprep.mubr.bf16.mxu0 %v759
    %1285 = vmatmul.mubr.bf16.gmra.mxu0 %v758
    %v1286 = vpop.f32.mrf.mxu0
    %v1287 = vadd.f32 0.0, %v1286
    %v1288 = vpop.f32.mrf.mxu0
    %v1289 = vadd.f32 0.0, %v1288
    %v1290 = vpop.f32.mrf.mxu0
    %v1291 = vadd.f32 0.0, %v1290
    %v1292 = vpop.f32.mrf.mxu0
    %v1293 = vadd.f32 0.0, %v1292
    %1294 = vmatprep.mubr.bf16.mxu0 %v765
    %1295 = vmatmul.mubr.bf16.gmra.mxu0 %v764
    %v1296 = vpop.f32.mrf.mxu0
    %v1297 = vadd.f32 0.0, %v1296
    %v1298 = vpop.f32.mrf.mxu0
    %v1299 = vadd.f32 0.0, %v1298
    %v1300 = vpop.f32.mrf.mxu0
    %v1301 = vadd.f32 0.0, %v1300
    %v1302 = vpop.f32.mrf.mxu0
    %v1303 = vadd.f32 0.0, %v1302
    %1304 = vdwg.mxu0
    %1305 = vmatprep.subr.bf16.mxu0 %v1099
    %1306 = vmatpush1.bf16.msra.mxu0 %v1098
    %1307 = vmatprep.subr.bf16.mxu0 %v1097
    %1308 = vmatpush1.bf16.msra.mxu0 %v1096
    %1309 = vmatprep.subr.bf16.mxu0 %v1095
    %1310 = vmatpush1.bf16.msra.mxu0 %v1094
    %1311 = vmatprep.subr.bf16.mxu0 %v1093
    %1312 = vmatpush1.bf16.msra.mxu0 %v1092
    %1313 = vmatprep.subr.bf16.mxu0 %v1091
    %1314 = vmatpush1.bf16.msra.mxu0 %v1090
    %1315 = vmatprep.subr.bf16.mxu0 %v1089
    %1316 = vmatpush1.bf16.msra.mxu0 %v1088
    %1317 = vmatprep.subr.bf16.mxu0 %v1087
    %1318 = vmatpush1.bf16.msra.mxu0 %v1086
    %1319 = vmatprep.subr.bf16.mxu0 %v1085
    %1320 = vmatpush1.bf16.msra.mxu0 %v1084
    %1321 = vmatprep.subr.bf16.mxu0 %v1115
    %1322 = vmatpush2.bf16.msra.mxu0 %v1114
    %1323 = vmatprep.subr.bf16.mxu0 %v1113
    %1324 = vmatpush2.bf16.msra.mxu0 %v1112
    %1325 = vmatprep.subr.bf16.mxu0 %v1111
    %1326 = vmatpush2.bf16.msra.mxu0 %v1110
    %1327 = vmatprep.subr.bf16.mxu0 %v1109
    %1328 = vmatpush2.bf16.msra.mxu0 %v1108
    %1329 = vmatprep.subr.bf16.mxu0 %v1107
    %1330 = vmatpush2.bf16.msra.mxu0 %v1106
    %1331 = vmatprep.subr.bf16.mxu0 %v1105
    %1332 = vmatpush2.bf16.msra.mxu0 %v1104
    %1333 = vmatprep.subr.bf16.mxu0 %v1103
    %1334 = vmatpush2.bf16.msra.mxu0 %v1102
    %1335 = vmatprep.subr.bf16.mxu0 %v1101
    %1336 = vmatpush2.bf16.msra.mxu0 %v1100
    %1337 = vmatprep.mubr.bf16.mxu0 %v761
    %1338 = vmatmul.mubr.bf16.gmra.mxu0 %v760
    %v1339 = vpop.f32.mrf.mxu0
    %v1340 = vadd.f32 %v1287, %v1339
    %v1341 = vpop.f32.mrf.mxu0
    %v1342 = vadd.f32 %v1289, %v1341
    %v1343 = vpop.f32.mrf.mxu0
    %v1344 = vadd.f32 %v1291, %v1343
    %v1345 = vpop.f32.mrf.mxu0
    %v1346 = vadd.f32 %v1293, %v1345
    %1347 = vmatprep.mubr.bf16.mxu0 %v767
    %1348 = vmatmul.mubr.bf16.gmra.mxu0 %v766
    %v1349 = vpop.f32.mrf.mxu0
    %v1350 = vadd.f32 %v1297, %v1349
    %v1351 = vpop.f32.mrf.mxu0
    %v1352 = vadd.f32 %v1299, %v1351
    %v1353 = vpop.f32.mrf.mxu0
    %v1354 = vadd.f32 %v1301, %v1353
    %v1355 = vpop.f32.mrf.mxu0
    %v1356 = vadd.f32 %v1303, %v1355
    %1357 = vdwg.mxu0
    %1358 = vmatprep.subr.bf16.mxu0 %v1131
    %1359 = vmatpush1.bf16.msra.mxu0 %v1130
    %1360 = vmatprep.subr.bf16.mxu0 %v1129
    %1361 = vmatpush1.bf16.msra.mxu0 %v1128
    %1362 = vmatprep.subr.bf16.mxu0 %v1127
    %1363 = vmatpush1.bf16.msra.mxu0 %v1126
    %1364 = vmatprep.subr.bf16.mxu0 %v1125
    %1365 = vmatpush1.bf16.msra.mxu0 %v1124
    %1366 = vmatprep.subr.bf16.mxu0 %v1123
    %1367 = vmatpush1.bf16.msra.mxu0 %v1122
    %1368 = vmatprep.subr.bf16.mxu0 %v1121
    %1369 = vmatpush1.bf16.msra.mxu0 %v1120
    %1370 = vmatprep.subr.bf16.mxu0 %v1119
    %1371 = vmatpush1.bf16.msra.mxu0 %v1118
    %1372 = vmatprep.subr.bf16.mxu0 %v1117
    %1373 = vmatpush1.bf16.msra.mxu0 %v1116
    %1374 = vmatprep.subr.bf16.mxu0 0
    %1375 = vmatpush2.bf16.msra.mxu0 0
    %1376 = vmatprep.subr.bf16.mxu0 %v1250
    %1377 = vmatpush2.bf16.msra.mxu0 %v1247
    %1378 = vmatprep.subr.bf16.mxu0 %v1143
    %1379 = vmatpush2.bf16.msra.mxu0 %v1142
    %1380 = vmatprep.subr.bf16.mxu0 %v1141
    %1381 = vmatpush2.bf16.msra.mxu0 %v1140
    %1382 = vmatprep.subr.bf16.mxu0 %v1139
    %1383 = vmatpush2.bf16.msra.mxu0 %v1138
    %1384 = vmatprep.subr.bf16.mxu0 %v1137
    %1385 = vmatpush2.bf16.msra.mxu0 %v1136
    %1386 = vmatprep.subr.bf16.mxu0 %v1135
    %1387 = vmatpush2.bf16.msra.mxu0 %v1134
    %1388 = vmatprep.subr.bf16.mxu0 %v1133
    %1389 = vmatpush2.bf16.msra.mxu0 %v1132
    %1390 = vmatprep.mubr.bf16.mxu0 %v1240
    %1391 = vmatmul.mubr.bf16.gmra.mxu0 %v762
    %v1392 = vpop.f32.mrf.mxu0
    %v1393 = vadd.f32 %v1340, %v1392
    %v1394 = vpop.f32.mrf.mxu0
    %v1395 = vadd.f32 %v1342, %v1394
    %v1396 = vpop.f32.mrf.mxu0
    %v1397 = vadd.f32 %v1344, %v1396
    %v1398 = vpop.f32.mrf.mxu0
    %v1399 = vadd.f32 %v1346, %v1398
    %1400 = vmatprep.mubr.bf16.mxu0 %v1243
    %1401 = vmatmul.mubr.bf16.gmra.mxu0 %v768
    %v1402 = vpop.f32.mrf.mxu0
    %v1403 = vadd.f32 %v1350, %v1402
    %v1404 = vpop.f32.mrf.mxu0
    %v1405 = vadd.f32 %v1352, %v1404
    %v1406 = vpop.f32.mrf.mxu0
    %v1407 = vadd.f32 %v1354, %v1406
    %v1408 = vpop.f32.mrf.mxu0
    %v1409 = vadd.f32 %v1356, %v1408
    %1410 = vdwg.mxu0
    %v1411 = vpack.c.bf16 %v1397, %v1393
    %v1412 = vpack.c.bf16 %v1399, %v1395
    %v1413 = vpack.c.bf16 %v1407, %v1403
    %v1414 = vpack.c.bf16 %v1409, %v1405
    %1419 = vrot.lane.b32.xlu0 %v1411, 127
    %v1420 = vpop.permute.xlu0 %1419
    %1421 = vrot.lane.b32.xlu0 %v1412, 127
    %v1422 = vpop.permute.xlu0 %1421
    %1423 = vrot.lane.b32.xlu0 %v1413, 127
    %v1424 = vpop.permute.xlu0 %1423
    %1425 = vrot.lane.b32.xlu0 %v1414, 127
    %v1426 = vpop.permute.xlu0 %1425
    %vm1427 = vcmask 1039360
    %v1428 = vsel %vm1427, %v1420, %v1422
    %v1429 = vsel %vm1427, %v1424, %v1426
    %1434 = vrot.lane.b32.xlu0 %v1411, 126
    %v1435 = vpop.permute.xlu0 %1434
    %1436 = vrot.lane.b32.xlu0 %v1412, 126
    %v1437 = vpop.permute.xlu0 %1436
    %1438 = vrot.lane.b32.xlu0 %v1413, 126
    %v1439 = vpop.permute.xlu0 %1438
    %1440 = vrot.lane.b32.xlu0 %v1414, 126
    %v1441 = vpop.permute.xlu0 %1440
    %vm1442 = vcmask 1031168
    %v1443 = vsel %vm1442, %v1435, %v1437
    %v1444 = vsel %vm1442, %v1439, %v1441
    %1449 = vrot.lane.b32.xlu0 %v1411, 125
    %v1450 = vpop.permute.xlu0 %1449
    %1451 = vrot.lane.b32.xlu0 %v1412, 125
    %v1452 = vpop.permute.xlu0 %1451
    %1453 = vrot.lane.b32.xlu0 %v1413, 125
    %v1454 = vpop.permute.xlu0 %1453
    %1455 = vrot.lane.b32.xlu0 %v1414, 125
    %v1456 = vpop.permute.xlu0 %1455
    %vm1457 = vcmask 1022976
    %v1458 = vsel %vm1457, %v1450, %v1452
    %v1459 = vsel %vm1457, %v1454, %v1456
    %1464 = vrot.lane.b32.xlu0 %v1411, 124
    %v1465 = vpop.permute.xlu0 %1464
    %1466 = vrot.lane.b32.xlu0 %v1412, 124
    %v1467 = vpop.permute.xlu0 %1466
    %1468 = vrot.lane.b32.xlu0 %v1413, 124
    %v1469 = vpop.permute.xlu0 %1468
    %1470 = vrot.lane.b32.xlu0 %v1414, 124
    %v1471 = vpop.permute.xlu0 %1470
    %vm1472 = vcmask 1014784
    %v1473 = vsel %vm1472, %v1465, %v1467
    %v1474 = vsel %vm1472, %v1469, %v1471
    %1479 = vrot.lane.b32.xlu0 %v1411, 123
    %v1480 = vpop.permute.xlu0 %1479
    %1481 = vrot.lane.b32.xlu0 %v1412, 123
    %v1482 = vpop.permute.xlu0 %1481
    %1483 = vrot.lane.b32.xlu0 %v1413, 123
    %v1484 = vpop.permute.xlu0 %1483
    %1485 = vrot.lane.b32.xlu0 %v1414, 123
    %v1486 = vpop.permute.xlu0 %1485
    %vm1487 = vcmask 1006592
    %v1488 = vsel %vm1487, %v1480, %v1482
    %v1489 = vsel %vm1487, %v1484, %v1486
    %1494 = vrot.lane.b32.xlu0 %v1411, 122
    %v1495 = vpop.permute.xlu0 %1494
    %1496 = vrot.lane.b32.xlu0 %v1412, 122
    %v1497 = vpop.permute.xlu0 %1496
    %1498 = vrot.lane.b32.xlu0 %v1413, 122
    %v1499 = vpop.permute.xlu0 %1498
    %1500 = vrot.lane.b32.xlu0 %v1414, 122
    %v1501 = vpop.permute.xlu0 %1500
    %vm1502 = vcmask 998400
    %v1503 = vsel %vm1502, %v1495, %v1497
    %v1504 = vsel %vm1502, %v1499, %v1501
    %1509 = vrot.lane.b32.xlu0 %v1411, 121
    %v1510 = vpop.permute.xlu0 %1509
    %1511 = vrot.lane.b32.xlu0 %v1412, 121
    %v1512 = vpop.permute.xlu0 %1511
    %1513 = vrot.lane.b32.xlu0 %v1413, 121
    %v1514 = vpop.permute.xlu0 %1513
    %1515 = vrot.lane.b32.xlu0 %v1414, 121
    %v1516 = vpop.permute.xlu0 %1515
    %vm1517 = vcmask 990208
    %v1518 = vsel %vm1517, %v1510, %v1512
    %v1519 = vsel %vm1517, %v1514, %v1516
    %1524 = vrot.lane.b32.xlu0 %v1411, 120
    %v1525 = vpop.permute.xlu0 %1524
    %1526 = vrot.lane.b32.xlu0 %v1412, 120
    %v1527 = vpop.permute.xlu0 %1526
    %1528 = vrot.lane.b32.xlu0 %v1413, 120
    %v1529 = vpop.permute.xlu0 %1528
    %1530 = vrot.lane.b32.xlu0 %v1414, 120
    %v1531 = vpop.permute.xlu0 %1530
    %vm1532 = vcmask 982016
    %v1533 = vsel %vm1532, %v1525, %v1527
    %v1534 = vsel %vm1532, %v1529, %v1531
    %1539 = vrot.lane.b32.xlu0 %v1411, 119
    %v1540 = vpop.permute.xlu0 %1539
    %1541 = vrot.lane.b32.xlu0 %v1412, 119
    %v1542 = vpop.permute.xlu0 %1541
    %1543 = vrot.lane.b32.xlu0 %v1413, 119
    %v1544 = vpop.permute.xlu0 %1543
    %1545 = vrot.lane.b32.xlu0 %v1414, 119
    %v1546 = vpop.permute.xlu0 %1545
    %vm1547 = vcmask 973824
    %v1548 = vsel %vm1547, %v1540, %v1542
    %v1549 = vsel %vm1547, %v1544, %v1546
    %1554 = vrot.lane.b32.xlu0 %v1411, 118
    %v1555 = vpop.permute.xlu0 %1554
    %1556 = vrot.lane.b32.xlu0 %v1412, 118
    %v1557 = vpop.permute.xlu0 %1556
    %1558 = vrot.lane.b32.xlu0 %v1413, 118
    %v1559 = vpop.permute.xlu0 %1558
    %1560 = vrot.lane.b32.xlu0 %v1414, 118
    %v1561 = vpop.permute.xlu0 %1560
    %vm1562 = vcmask 965632
    %v1563 = vsel %vm1562, %v1555, %v1557
    %v1564 = vsel %vm1562, %v1559, %v1561
    %1569 = vrot.lane.b32.xlu0 %v1411, 117
    %v1570 = vpop.permute.xlu0 %1569
    %1571 = vrot.lane.b32.xlu0 %v1412, 117
    %v1572 = vpop.permute.xlu0 %1571
    %1573 = vrot.lane.b32.xlu0 %v1413, 117
    %v1574 = vpop.permute.xlu0 %1573
    %1575 = vrot.lane.b32.xlu0 %v1414, 117
    %v1576 = vpop.permute.xlu0 %1575
    %vm1577 = vcmask 957440
    %v1578 = vsel %vm1577, %v1570, %v1572
    %v1579 = vsel %vm1577, %v1574, %v1576
    %1584 = vrot.lane.b32.xlu0 %v1411, 116
    %v1585 = vpop.permute.xlu0 %1584
    %1586 = vrot.lane.b32.xlu0 %v1412, 116
    %v1587 = vpop.permute.xlu0 %1586
    %1588 = vrot.lane.b32.xlu0 %v1413, 116
    %v1589 = vpop.permute.xlu0 %1588
    %1590 = vrot.lane.b32.xlu0 %v1414, 116
    %v1591 = vpop.permute.xlu0 %1590
    %vm1592 = vcmask 949248
    %v1593 = vsel %vm1592, %v1585, %v1587
    %v1594 = vsel %vm1592, %v1589, %v1591
    %1599 = vrot.lane.b32.xlu0 %v1411, 115
    %v1600 = vpop.permute.xlu0 %1599
    %1601 = vrot.lane.b32.xlu0 %v1412, 115
    %v1602 = vpop.permute.xlu0 %1601
    %1603 = vrot.lane.b32.xlu0 %v1413, 115
    %v1604 = vpop.permute.xlu0 %1603
    %1605 = vrot.lane.b32.xlu0 %v1414, 115
    %v1606 = vpop.permute.xlu0 %1605
    %vm1607 = vcmask 941056
    %v1608 = vsel %vm1607, %v1600, %v1602
    %v1609 = vsel %vm1607, %v1604, %v1606
    %1614 = vrot.lane.b32.xlu0 %v1411, 114
    %v1615 = vpop.permute.xlu0 %1614
    %1616 = vrot.lane.b32.xlu0 %v1412, 114
    %v1617 = vpop.permute.xlu0 %1616
    %1618 = vrot.lane.b32.xlu0 %v1413, 114
    %v1619 = vpop.permute.xlu0 %1618
    %1620 = vrot.lane.b32.xlu0 %v1414, 114
    %v1621 = vpop.permute.xlu0 %1620
    %vm1622 = vcmask 932864
    %v1623 = vsel %vm1622, %v1615, %v1617
    %v1624 = vsel %vm1622, %v1619, %v1621
    %1630 = vset.pattern.permute.xlu0 0
    %1631 = vperm.xlu0 %1630, %v141
    %v1632 = vpop.permute.xlu0 %1631
    %1635 = vset.pattern.permute.xlu0 0
    %1636 = vperm.xlu0 %1635, %v142
    %v1637 = vpop.permute.xlu0 %1636
    %1640 = vset.pattern.permute.xlu0 0
    %1641 = vperm.xlu0 %1640, %v143
    %v1642 = vpop.permute.xlu0 %1641
    %1645 = vset.pattern.permute.xlu0 0
    %1646 = vperm.xlu0 %1645, %v144
    %v1647 = vpop.permute.xlu0 %1646
    %v1657 = vunpack.c.l.b16 %v133
    %v1658 = vunpack.c.h.b16 %v133
    %v1659 = vunpack.c.l.b16 %v134
    %v1660 = vunpack.c.h.b16 %v134
    %v1661 = vunpack.c.l.b16 %v135
    %v1662 = vunpack.c.h.b16 %v135
    %v1663 = vunpack.c.l.b16 %v136
    %v1664 = vunpack.c.h.b16 %v136
    %v1665 = vunpack.c.l.b16 %v137
    %v1666 = vunpack.c.h.b16 %v137
    %v1667 = vunpack.c.l.b16 %v138
    %v1668 = vunpack.c.h.b16 %v138
    %v1669 = vunpack.c.l.b16 %v139
    %v1670 = vunpack.c.h.b16 %v139
    %v1671 = vunpack.c.l.b16 %v140
    %v1672 = vunpack.c.h.b16 %v140
    %v1673 = vpack.c.b16 %v1661, %v1657
    %v1674 = vpack.c.b16 %v1662, %v1658
    %v1675 = vpack.c.b16 %v1663, %v1659
    %v1676 = vpack.c.b16 %v1664, %v1660
    %v1677 = vpack.c.b16 %v1669, %v1665
    %v1678 = vpack.c.b16 %v1670, %v1666
    %v1679 = vpack.c.b16 %v1671, %v1667
    %v1680 = vpack.c.b16 %v1672, %v1668
    %vm1687 = vcmask 785408
    %v1689 = vsel %vm1687, %v1676, 0
    %v1692 = vsel %vm1687, %v1680, 0
    %1694 = vmatprep.subr.bf16.mxu0 %v1456
    %1695 = vmatpush1.bf16.msra.mxu0 %v1459
    %1696 = vmatprep.subr.bf16.mxu0 %v1452
    %1697 = vmatpush1.bf16.msra.mxu0 %v1458
    %1698 = vmatprep.subr.bf16.mxu0 %v1441
    %1699 = vmatpush1.bf16.msra.mxu0 %v1444
    %1700 = vmatprep.subr.bf16.mxu0 %v1437
    %1701 = vmatpush1.bf16.msra.mxu0 %v1443
    %1702 = vmatprep.subr.bf16.mxu0 %v1426
    %1703 = vmatpush1.bf16.msra.mxu0 %v1429
    %1704 = vmatprep.subr.bf16.mxu0 %v1422
    %1705 = vmatpush1.bf16.msra.mxu0 %v1428
    %1706 = vmatprep.subr.bf16.mxu0 %v1414
    %1707 = vmatpush1.bf16.msra.mxu0 %v1413
    %1708 = vmatprep.subr.bf16.mxu0 %v1412
    %1709 = vmatpush1.bf16.msra.mxu0 %v1411
    %1710 = vmatprep.subr.bf16.mxu0 %v1516
    %1711 = vmatpush2.bf16.msra.mxu0 %v1519
    %1712 = vmatprep.subr.bf16.mxu0 %v1512
    %1713 = vmatpush2.bf16.msra.mxu0 %v1518
    %1714 = vmatprep.subr.bf16.mxu0 %v1501
    %1715 = vmatpush2.bf16.msra.mxu0 %v1504
    %1716 = vmatprep.subr.bf16.mxu0 %v1497
    %1717 = vmatpush2.bf16.msra.mxu0 %v1503
    %1718 = vmatprep.subr.bf16.mxu0 %v1486
    %1719 = vmatpush2.bf16.msra.mxu0 %v1489
    %1720 = vmatprep.subr.bf16.mxu0 %v1482
    %1721 = vmatpush2.bf16.msra.mxu0 %v1488
    %1722 = vmatprep.subr.bf16.mxu0 %v1471
    %1723 = vmatpush2.bf16.msra.mxu0 %v1474
    %1724 = vmatprep.subr.bf16.mxu0 %v1467
    %1725 = vmatpush2.bf16.msra.mxu0 %v1473
    %1726 = vmatprep.mubr.bf16.mxu0 %v1674
    %1727 = vmatmul.mubr.bf16.gmra.mxu0 %v1673
    %v1728 = vpop.f32.mrf.mxu0
    %v1729 = vadd.f32 %v1632, %v1728
    %v1730 = vpop.f32.mrf.mxu0
    %v1731 = vadd.f32 %v1632, %v1730
    %v1732 = vpop.f32.mrf.mxu0
    %v1733 = vadd.f32 %v1637, %v1732
    %v1734 = vpop.f32.mrf.mxu0
    %v1735 = vadd.f32 %v1637, %v1734
    %1736 = vmatprep.mubr.bf16.mxu0 %v1678
    %1737 = vmatmul.mubr.bf16.gmra.mxu0 %v1677
    %v1738 = vpop.f32.mrf.mxu0
    %v1739 = vadd.f32 %v1642, %v1738
    %v1740 = vpop.f32.mrf.mxu0
    %v1741 = vadd.f32 %v1642, %v1740
    %v1742 = vpop.f32.mrf.mxu0
    %v1743 = vadd.f32 %v1647, %v1742
    %v1744 = vpop.f32.mrf.mxu0
    %v1745 = vadd.f32 %v1647, %v1744
    %1746 = vdwg.mxu0
    %1747 = vmatprep.subr.bf16.mxu0 %v1576
    %1748 = vmatpush1.bf16.msra.mxu0 %v1579
    %1749 = vmatprep.subr.bf16.mxu0 %v1572
    %1750 = vmatpush1.bf16.msra.mxu0 %v1578
    %1751 = vmatprep.subr.bf16.mxu0 %v1561
    %1752 = vmatpush1.bf16.msra.mxu0 %v1564
    %1753 = vmatprep.subr.bf16.mxu0 %v1557
    %1754 = vmatpush1.bf16.msra.mxu0 %v1563
    %1755 = vmatprep.subr.bf16.mxu0 %v1546
    %1756 = vmatpush1.bf16.msra.mxu0 %v1549
    %1757 = vmatprep.subr.bf16.mxu0 %v1542
    %1758 = vmatpush1.bf16.msra.mxu0 %v1548
    %1759 = vmatprep.subr.bf16.mxu0 %v1531
    %1760 = vmatpush1.bf16.msra.mxu0 %v1534
    %1761 = vmatprep.subr.bf16.mxu0 %v1527
    %1762 = vmatpush1.bf16.msra.mxu0 %v1533
    %1763 = vmatprep.subr.bf16.mxu0 0
    %1764 = vmatpush2.bf16.msra.mxu0 0
    %1765 = vmatprep.subr.bf16.mxu0 0
    %1766 = vmatpush2.bf16.msra.mxu0 0
    %1767 = vmatprep.subr.bf16.mxu0 %v1621
    %1768 = vmatpush2.bf16.msra.mxu0 %v1624
    %1769 = vmatprep.subr.bf16.mxu0 %v1617
    %1770 = vmatpush2.bf16.msra.mxu0 %v1623
    %1771 = vmatprep.subr.bf16.mxu0 %v1606
    %1772 = vmatpush2.bf16.msra.mxu0 %v1609
    %1773 = vmatprep.subr.bf16.mxu0 %v1602
    %1774 = vmatpush2.bf16.msra.mxu0 %v1608
    %1775 = vmatprep.subr.bf16.mxu0 %v1591
    %1776 = vmatpush2.bf16.msra.mxu0 %v1594
    %1777 = vmatprep.subr.bf16.mxu0 %v1587
    %1778 = vmatpush2.bf16.msra.mxu0 %v1593
    %1779 = vmatprep.mubr.bf16.mxu0 %v1689
    %1780 = vmatmul.mubr.bf16.gmra.mxu0 %v1675
    %v1781 = vpop.f32.mrf.mxu0
    %v1782 = vadd.f32 %v1729, %v1781
    %v1783 = vpop.f32.mrf.mxu0
    %v1784 = vadd.f32 %v1731, %v1783
    %v1785 = vpop.f32.mrf.mxu0
    %v1786 = vadd.f32 %v1733, %v1785
    %v1787 = vpop.f32.mrf.mxu0
    %v1788 = vadd.f32 %v1735, %v1787
    %1789 = vmatprep.mubr.bf16.mxu0 %v1692
    %1790 = vmatmul.mubr.bf16.gmra.mxu0 %v1679
    %v1791 = vpop.f32.mrf.mxu0
    %v1792 = vadd.f32 %v1739, %v1791
    %v1793 = vpop.f32.mrf.mxu0
    %v1794 = vadd.f32 %v1741, %v1793
    %v1795 = vpop.f32.mrf.mxu0
    %v1796 = vadd.f32 %v1743, %v1795
    %v1797 = vpop.f32.mrf.mxu0
    %v1798 = vadd.f32 %v1745, %v1797
    %1799 = vdwg.mxu0
    %vm1800 = vcmp.gt.f32.partialorder %v1782, 0.0
    %vm1801 = vcmp.gt.f32.partialorder %v1784, 0.0
    %vm1802 = vcmp.gt.f32.partialorder %v1786, 0.0
    %vm1803 = vcmp.gt.f32.partialorder %v1788, 0.0
    %vm1804 = vcmp.gt.f32.partialorder %v1792, 0.0
    %vm1805 = vcmp.gt.f32.partialorder %v1794, 0.0
    %vm1806 = vcmp.gt.f32.partialorder %v1796, 0.0
    %vm1807 = vcmp.gt.f32.partialorder %v1798, 0.0
    %v1808 = vmin.f32 %v1782, 0.0
    %v1809 = vmin.f32 %v1784, 0.0
    %v1810 = vmin.f32 %v1786, 0.0
    %v1811 = vmin.f32 %v1788, 0.0
    %v1812 = vmin.f32 %v1792, 0.0
    %v1813 = vmin.f32 %v1794, 0.0
    %v1814 = vmin.f32 %v1796, 0.0
    %v1815 = vmin.f32 %v1798, 0.0
    %v1816 = vmul.f32 %v1808, 1.442695
    %v1817 = vpow.pop %v1816
    %v1818 = vmul.f32 %v1809, 1.442695
    %v1819 = vpow.pop %v1818
    %v1820 = vmul.f32 %v1810, 1.442695
    %v1821 = vpow.pop %v1820
    %v1822 = vmul.f32 %v1811, 1.442695
    %v1823 = vpow.pop %v1822
    %v1824 = vmul.f32 %v1812, 1.442695
    %v1825 = vpow.pop %v1824
    %v1826 = vmul.f32 %v1813, 1.442695
    %v1827 = vpow.pop %v1826
    %v1828 = vmul.f32 %v1814, 1.442695
    %v1829 = vpow.pop %v1828
    %v1830 = vmul.f32 %v1815, 1.442695
    %v1831 = vpow.pop %v1830
    %v1832 = vsub.f32 %v1817, 1.0
    %v1833 = vsub.f32 %v1819, 1.0
    %v1834 = vsub.f32 %v1821, 1.0
    %v1835 = vsub.f32 %v1823, 1.0
    %v1836 = vsub.f32 %v1825, 1.0
    %v1837 = vsub.f32 %v1827, 1.0
    %v1838 = vsub.f32 %v1829, 1.0
    %v1839 = vsub.f32 %v1831, 1.0
    %v1840 = vsel %vm1800, %v1782, %v1832
    %v1841 = vsel %vm1801, %v1784, %v1833
    %v1842 = vsel %vm1802, %v1786, %v1834
    %v1843 = vsel %vm1803, %v1788, %v1835
    %v1844 = vsel %vm1804, %v1792, %v1836
    %v1845 = vsel %vm1805, %v1794, %v1837
    %v1846 = vsel %vm1806, %v1796, %v1838
    %v1847 = vsel %vm1807, %v1798, %v1839
    %v1848 = vmul.f32 %v1840, %v145
    %v1849 = vmul.f32 %v1841, %v146
    %v1850 = vmul.f32 %v1842, %v147
    %v1851 = vmul.f32 %v1843, %v148
    %v1852 = vmul.f32 %v1844, %v149
    %v1853 = vmul.f32 %v1845, %v150
    %v1854 = vmul.f32 %v1846, %v151
    %v1855 = vmul.f32 %v1847, %v152
    %vm1856 = vcmask 482304
    %v1857 = vsel %vm1856, %v1849, 0.0
    %v1858 = vadd.f32 %v1848, %v1857
    %v1859 = vadd.f32 %v1858, %v1850
    %v1860 = vsel %vm1856, %v1851, 0.0
    %v1861 = vadd.f32 %v1859, %v1860
    %v1862 = vadd.f32 %v1861, %v1852
    %v1863 = vsel %vm1856, %v1853, 0.0
    %v1864 = vadd.f32 %v1862, %v1863
    %v1865 = vadd.f32 %v1864, %v1854
    %v1866 = vsel %vm1856, %v1855, 0.0
    %v1867 = vadd.f32 %v1865, %v1866
    %1868 = vadd.xlane.f32.xlu0 %v1867
    %v1869 = vpop.xlane.xlu0 %1868
    %v1870 = vrot.slane %v1869, 4
    %v1871 = vadd.f32 %v1869, %v1870
    %v1872 = vrot.slane %v1871, 2
    %v1873 = vadd.f32 %v1871, %v1872
    %v1874 = vrot.slane %v1873, 1
    %v1875 = vadd.f32 %v1873, %v1874
    %s1876 = vtos %v1875
    %v1877 = vmul.f32 %v1840, %v154
    %v1878 = vmul.f32 %v1841, %v155
    %v1879 = vmul.f32 %v1842, %v156
    %v1880 = vmul.f32 %v1843, %v157
    %v1881 = vmul.f32 %v1844, %v158
    %v1882 = vmul.f32 %v1845, %v159
    %v1883 = vmul.f32 %v1846, %v160
    %v1884 = vmul.f32 %v1847, %v161
    %v1885 = vsel %vm1856, %v1878, 0.0
    %v1886 = vadd.f32 %v1877, %v1885
    %v1887 = vadd.f32 %v1886, %v1879
    %v1888 = vsel %vm1856, %v1880, 0.0
    %v1889 = vadd.f32 %v1887, %v1888
    %v1890 = vadd.f32 %v1889, %v1881
    %v1891 = vsel %vm1856, %v1882, 0.0
    %v1892 = vadd.f32 %v1890, %v1891
    %v1893 = vadd.f32 %v1892, %v1883
    %v1894 = vsel %vm1856, %v1884, 0.0
    %v1895 = vadd.f32 %v1893, %v1894
    %1896 = vadd.xlane.f32.xlu0 %v1895
    %v1897 = vpop.xlane.xlu0 %1896
    %v1898 = vrot.slane %v1897, 4
    %v1899 = vadd.f32 %v1897, %v1898
    %v1900 = vrot.slane %v1899, 2
    %v1901 = vadd.f32 %v1899, %v1900
    %v1902 = vrot.slane %v1901, 1
    %v1903 = vadd.f32 %v1901, %v1902
    %s1904 = vtos %v1903
    %vm1905 = vcmp.eq.s32.totalorder %v164, 0
    %vm1906 = vcmp.eq.s32.totalorder %v164, 1
    %v1907 = vstv %s1904
    %v1908 = vsel %vm1906, %v1907, 0.0
    %v1909 = vstv %s1876
    %v1910 = vsel %vm1905, %v1909, %v1908
    %v1911 = vadd.f32 %v1910, %v162
    %s1912 = scalar_lea.vmem %s0, 312
    %v1913 = vld [vmem:[%s1912] sm:$0xff]
    %v1914 = vld [vmem:[%s1912 + $0x8] sm:$0xff]
    %v1915 = vld [vmem:[%s1912 + $0x10] sm:$0xff]
    %v1916 = vld [vmem:[%s1912 + $0x18] sm:$0xff]
    %v1917 = vld [vmem:[%s1912 + $0x20] sm:$0xff]
    %v1918 = vld [vmem:[%s1912 + $0x28] sm:$0xff]
    %v1919 = vld [vmem:[%s1912 + $0x30] sm:$0xff]
    %v1920 = vld [vmem:[%s1912 + $0x38] sm:$0xff]
    %v1921 = vld [vmem:[%s1912 + $0x40] sm:$0xff]
    %v1922 = vld [vmem:[%s1912 + $0x48] sm:$0xff]
    %v1923 = vld [vmem:[%s1912 + $0x50] sm:$0xff]
    %v1924 = vld [vmem:[%s1912 + $0x58] sm:$0xff]
    %v1925 = vld [vmem:[%s1912 + $0x60] sm:$0xff]
    %v1926 = vld [vmem:[%s1912 + $0x68] sm:$0xff]
    %v1927 = vld [vmem:[%s1912 + $0x70] sm:$0xff]
    %v1928 = vld [vmem:[%s1912 + $0x78] sm:$0xff]
    %v1929 = vld [vmem:[%s1912 + $0x80] sm:$0xff]
    %v1930 = vld [vmem:[%s1912 + $0x88] sm:$0xff]
    %v1931 = vld [vmem:[%s1912 + $0x90] sm:$0xff]
    %v1932 = vld [vmem:[%s1912 + $0x98] sm:$0xff]
    %v1933 = vld [vmem:[%s1912 + $0xa0] sm:$0xff]
    %v1934 = vld [vmem:[%s1912 + $0xa8] sm:$0xff]
    %v1935 = vld [vmem:[%s1912 + $0xb0] sm:$0xff]
    %v1936 = vld [vmem:[%s1912 + $0xb8] sm:$0xff]
    %v1937 = vld [vmem:[%s1912 + $0xc0] sm:$0xff]
    %v1938 = vld [vmem:[%s1912 + $0xc8] sm:$0xff]
    %v1939 = vld [vmem:[%s1912 + $0xd0] sm:$0xff]
    %v1940 = vld [vmem:[%s1912 + $0xd8] sm:$0xff]
    %v1941 = vld [vmem:[%s1912 + $0xe0] sm:$0xff]
    %v1942 = vld [vmem:[%s1912 + $0xe8] sm:$0xff]
    %v1943 = vld [vmem:[%s1912 + $0xf0] sm:$0xff]
    %v1944 = vld [vmem:[%s1912 + $0xf8] sm:$0xff]
    %v1945 = vld [vmem:[%s1912 + $0x100] sm:$0xff]
    %v1946 = vld [vmem:[%s1912 + $0x108] sm:$0xff]
    %v1947 = vld [vmem:[%s1912 + $0x110] sm:$0xff]
    %v1948 = vld [vmem:[%s1912 + $0x118] sm:$0xff]
    %v1949 = vld [vmem:[%s1912 + $0x120] sm:$0x77]
    %v1950 = vld [vmem:[%s1912 + $0x128] sm:$0x77]
    %v1951 = vld [vmem:[%s1912 + $0x130] sm:$0x77]
    %v1991 = vunpack.c.l.b16 %v1913
    %v1992 = vunpack.c.h.b16 %v1913
    %v1993 = vunpack.c.l.b16 %v1914
    %v1994 = vunpack.c.h.b16 %v1914
    %v1995 = vunpack.c.l.b16 %v1915
    %v1996 = vunpack.c.h.b16 %v1915
    %v1997 = vunpack.c.l.b16 %v1916
    %v1998 = vunpack.c.h.b16 %v1916
    %v1999 = vunpack.c.l.b16 %v1917
    %v2000 = vunpack.c.h.b16 %v1917
    %v2001 = vunpack.c.l.b16 %v1918
    %v2002 = vunpack.c.h.b16 %v1918
    %v2003 = vunpack.c.l.b16 %v1919
    %v2004 = vunpack.c.h.b16 %v1919
    %v2005 = vunpack.c.l.b16 %v1920
    %v2006 = vunpack.c.h.b16 %v1920
    %v2007 = vunpack.c.l.b16 %v1921
    %v2008 = vunpack.c.h.b16 %v1921
    %v2009 = vunpack.c.l.b16 %v1922
    %v2010 = vunpack.c.h.b16 %v1922
    %v2011 = vunpack.c.l.b16 %v1923
    %v2012 = vunpack.c.h.b16 %v1923
    %v2013 = vunpack.c.l.b16 %v1924
    %v2014 = vunpack.c.h.b16 %v1924
    %v2015 = vunpack.c.l.b16 %v1925
    %v2016 = vunpack.c.h.b16 %v1925
    %v2017 = vunpack.c.l.b16 %v1926
    %v2018 = vunpack.c.h.b16 %v1926
    %v2019 = vunpack.c.l.b16 %v1927
    %v2020 = vunpack.c.h.b16 %v1927
    %v2021 = vunpack.c.l.b16 %v1928
    %v2022 = vunpack.c.h.b16 %v1928
    %v2023 = vunpack.c.l.b16 %v1929
    %v2024 = vunpack.c.h.b16 %v1929
    %v2025 = vunpack.c.l.b16 %v1930
    %v2026 = vunpack.c.h.b16 %v1930
    %v2027 = vunpack.c.l.b16 %v1931
    %v2028 = vunpack.c.h.b16 %v1931
    %v2029 = vunpack.c.l.b16 %v1932
    %v2030 = vunpack.c.h.b16 %v1932
    %v2031 = vunpack.c.l.b16 %v1933
    %v2032 = vunpack.c.h.b16 %v1933
    %v2033 = vunpack.c.l.b16 %v1934
    %v2034 = vunpack.c.h.b16 %v1934
    %v2035 = vunpack.c.l.b16 %v1935
    %v2036 = vunpack.c.h.b16 %v1935
    %v2037 = vunpack.c.l.b16 %v1936
    %v2038 = vunpack.c.h.b16 %v1936
    %v2039 = vunpack.c.l.b16 %v1937
    %v2040 = vunpack.c.h.b16 %v1937
    %v2041 = vunpack.c.l.b16 %v1938
    %v2042 = vunpack.c.h.b16 %v1938
    %v2043 = vunpack.c.l.b16 %v1939
    %v2044 = vunpack.c.h.b16 %v1939
    %v2045 = vunpack.c.l.b16 %v1940
    %v2046 = vunpack.c.h.b16 %v1940
    %v2047 = vunpack.c.l.b16 %v1941
    %v2048 = vunpack.c.h.b16 %v1941
    %v2049 = vunpack.c.l.b16 %v1942
    %v2050 = vunpack.c.h.b16 %v1942
    %v2051 = vunpack.c.l.b16 %v1943
    %v2052 = vunpack.c.h.b16 %v1943
    %v2053 = vunpack.c.l.b16 %v1944
    %v2054 = vunpack.c.h.b16 %v1944
    %v2055 = vunpack.c.l.b16 %v1945
    %v2056 = vunpack.c.h.b16 %v1945
    %v2057 = vunpack.c.l.b16 %v1946
    %v2058 = vunpack.c.h.b16 %v1946
    %v2059 = vunpack.c.l.b16 %v1947
    %v2060 = vunpack.c.h.b16 %v1947
    %v2061 = vunpack.c.l.b16 %v1948
    %v2062 = vunpack.c.h.b16 %v1948
    %v2063 = vunpack.c.l.b16 %v1949
    %v2064 = vunpack.c.h.b16 %v1949
    %v2065 = vunpack.c.l.b16 %v1950
    %v2066 = vunpack.c.h.b16 %v1950
    %v2067 = vunpack.c.l.b16 %v1951
    %v2068 = vunpack.c.h.b16 %v1951
    %v2069 = vpack.c.b16 %v1997, %v1991
    %v2070 = vpack.c.b16 %v1998, %v1992
    %v2071 = vpack.c.b16 %v1999, %v1993
    %v2072 = vpack.c.b16 %v2000, %v1994
    %v2073 = vpack.c.b16 %v2001, %v1995
    %v2074 = vpack.c.b16 %v2002, %v1996
    %v2075 = vpack.c.b16 %v2009, %v2003
    %v2076 = vpack.c.b16 %v2010, %v2004
    %v2077 = vpack.c.b16 %v2011, %v2005
    %v2078 = vpack.c.b16 %v2012, %v2006
    %v2079 = vpack.c.b16 %v2013, %v2007
    %v2080 = vpack.c.b16 %v2014, %v2008
    %v2081 = vpack.c.b16 %v2021, %v2015
    %v2082 = vpack.c.b16 %v2022, %v2016
    %v2083 = vpack.c.b16 %v2023, %v2017
    %v2084 = vpack.c.b16 %v2024, %v2018
    %v2085 = vpack.c.b16 %v2025, %v2019
    %v2086 = vpack.c.b16 %v2026, %v2020
    %v2087 = vpack.c.b16 %v2033, %v2027
    %v2088 = vpack.c.b16 %v2034, %v2028
    %v2089 = vpack.c.b16 %v2035, %v2029
    %v2090 = vpack.c.b16 %v2036, %v2030
    %v2091 = vpack.c.b16 %v2037, %v2031
    %v2092 = vpack.c.b16 %v2038, %v2032
    %v2093 = vpack.c.b16 %v2045, %v2039
    %v2094 = vpack.c.b16 %v2046, %v2040
    %v2095 = vpack.c.b16 %v2047, %v2041
    %v2096 = vpack.c.b16 %v2048, %v2042
    %v2097 = vpack.c.b16 %v2049, %v2043
    %v2098 = vpack.c.b16 %v2050, %v2044
    %v2099 = vpack.c.b16 %v2057, %v2051
    %v2100 = vpack.c.b16 %v2058, %v2052
    %v2101 = vpack.c.b16 %v2059, %v2053
    %v2102 = vpack.c.b16 %v2060, %v2054
    %v2103 = vpack.c.b16 %v2061, %v2055
    %v2104 = vpack.c.b16 %v2062, %v2056
    %v2105 = vpack.c.b16 %v2063, %v2063
    %v2106 = vpack.c.b16 %v2064, %v2064
    %v2107 = vpack.c.b16 %v2065, %v2065
    %v2108 = vpack.c.b16 %v2066, %v2066
    %v2109 = vpack.c.b16 %v2067, %v2067
    %v2110 = vpack.c.b16 %v2068, %v2068
    %v2148 = vsel %vm436, %v2105, 0
    %v2151 = vsel %vm436, %v2106, 0
    %v2154 = vsel %vm436, %v2107, 0
    %v2157 = vsel %vm436, %v2108, 0
    %v2160 = vsel %vm436, %v2109, 0
    %v2163 = vsel %vm436, %v2110, 0
    %2165 = vmatprep.subr.bf16.mxu0 0
    %2166 = vmatpush1.bf16.msra.mxu0 0
    %2167 = vmatprep.subr.bf16.mxu0 %v2151
    %2168 = vmatpush1.bf16.msra.mxu0 %v2148
    %2169 = vmatprep.subr.bf16.mxu0 %v2100
    %2170 = vmatpush1.bf16.msra.mxu0 %v2099
    %2171 = vmatprep.subr.bf16.mxu0 %v2094
    %2172 = vmatpush1.bf16.msra.mxu0 %v2093
    %2173 = vmatprep.subr.bf16.mxu0 %v2088
    %2174 = vmatpush1.bf16.msra.mxu0 %v2087
    %2175 = vmatprep.subr.bf16.mxu0 %v2082
    %2176 = vmatpush1.bf16.msra.mxu0 %v2081
    %2177 = vmatprep.subr.bf16.mxu0 %v2076
    %2178 = vmatpush1.bf16.msra.mxu0 %v2075
    %2179 = vmatprep.subr.bf16.mxu0 %v2070
    %2180 = vmatpush1.bf16.msra.mxu0 %v2069
    %2181 = vmatprep.subr.bf16.mxu0 0
    %2182 = vmatpush2.bf16.msra.mxu0 0
    %2183 = vmatprep.subr.bf16.mxu0 0
    %2184 = vmatpush2.bf16.msra.mxu0 0
    %2185 = vmatprep.subr.bf16.mxu0 0
    %2186 = vmatpush2.bf16.msra.mxu0 0
    %2187 = vmatprep.subr.bf16.mxu0 0
    %2188 = vmatpush2.bf16.msra.mxu0 0
    %2189 = vmatprep.subr.bf16.mxu0 0
    %2190 = vmatpush2.bf16.msra.mxu0 0
    %2191 = vmatprep.subr.bf16.mxu0 0
    %2192 = vmatpush2.bf16.msra.mxu0 0
    %2193 = vmatprep.subr.bf16.mxu0 0
    %2194 = vmatpush2.bf16.msra.mxu0 0
    %2195 = vmatprep.subr.bf16.mxu0 0
    %2196 = vmatpush2.bf16.msra.mxu0 0
    %2197 = vmatprep.mubr.bf16.mxu0 0
    %2198 = vmatmul.mubr.bf16.gmra.mxu0 %v431
    %v2199 = vpop.f32.mrf.mxu0
    %v2200 = vadd.f32 %v207, %v2199
    %v2201 = vpop.f32.mrf.mxu0
    %v2202 = vadd.f32 %v207, %v2201
    %v2203 = vpop.f32.mrf.mxu0
    %v2204 = vadd.f32 %v212, %v2203
    %v2205 = vpop.f32.mrf.mxu0
    %v2206 = vadd.f32 %v212, %v2205
    %2207 = vmatprep.mubr.bf16.mxu0 0
    %2208 = vmatmul.mubr.bf16.gmra.mxu0 %v434
    %v2209 = vpop.f32.mrf.mxu0
    %v2210 = vadd.f32 %v217, %v2209
    %v2211 = vpop.f32.mrf.mxu0
    %v2212 = vadd.f32 %v217, %v2211
    %v2213 = vpop.f32.mrf.mxu0
    %v2214 = vadd.f32 %v222, %v2213
    %v2215 = vpop.f32.mrf.mxu0
    %v2216 = vadd.f32 %v222, %v2215
    %2217 = vdwg.mxu0
    %2218 = vmatprep.subr.bf16.mxu0 0
    %2219 = vmatpush1.bf16.msra.mxu0 0
    %2220 = vmatprep.subr.bf16.mxu0 %v2157
    %2221 = vmatpush1.bf16.msra.mxu0 %v2154
    %2222 = vmatprep.subr.bf16.mxu0 %v2102
    %2223 = vmatpush1.bf16.msra.mxu0 %v2101
    %2224 = vmatprep.subr.bf16.mxu0 %v2096
    %2225 = vmatpush1.bf16.msra.mxu0 %v2095
    %2226 = vmatprep.subr.bf16.mxu0 %v2090
    %2227 = vmatpush1.bf16.msra.mxu0 %v2089
    %2228 = vmatprep.subr.bf16.mxu0 %v2084
    %2229 = vmatpush1.bf16.msra.mxu0 %v2083
    %2230 = vmatprep.subr.bf16.mxu0 %v2078
    %2231 = vmatpush1.bf16.msra.mxu0 %v2077
    %2232 = vmatprep.subr.bf16.mxu0 %v2072
    %2233 = vmatpush1.bf16.msra.mxu0 %v2071
    %2234 = vmatprep.subr.bf16.mxu0 0
    %2235 = vmatpush2.bf16.msra.mxu0 0
    %2236 = vmatprep.subr.bf16.mxu0 0
    %2237 = vmatpush2.bf16.msra.mxu0 0
    %2238 = vmatprep.subr.bf16.mxu0 0
    %2239 = vmatpush2.bf16.msra.mxu0 0
    %2240 = vmatprep.subr.bf16.mxu0 0
    %2241 = vmatpush2.bf16.msra.mxu0 0
    %2242 = vmatprep.subr.bf16.mxu0 0
    %2243 = vmatpush2.bf16.msra.mxu0 0
    %2244 = vmatprep.subr.bf16.mxu0 0
    %2245 = vmatpush2.bf16.msra.mxu0 0
    %2246 = vmatprep.subr.bf16.mxu0 0
    %2247 = vmatpush2.bf16.msra.mxu0 0
    %2248 = vmatprep.subr.bf16.mxu0 0
    %2249 = vmatpush2.bf16.msra.mxu0 0
    %2250 = vmatprep.mubr.bf16.mxu0 0
    %2251 = vmatmul.mubr.bf16.gmra.mxu0 %v431
    %v2252 = vpop.f32.mrf.mxu0
    %v2253 = vadd.f32 %v207, %v2252
    %v2254 = vpop.f32.mrf.mxu0
    %v2255 = vadd.f32 %v207, %v2254
    %v2256 = vpop.f32.mrf.mxu0
    %v2257 = vadd.f32 %v212, %v2256
    %v2258 = vpop.f32.mrf.mxu0
    %v2259 = vadd.f32 %v212, %v2258
    %2260 = vmatprep.mubr.bf16.mxu0 0
    %2261 = vmatmul.mubr.bf16.gmra.mxu0 %v434
    %v2262 = vpop.f32.mrf.mxu0
    %v2263 = vadd.f32 %v217, %v2262
    %v2264 = vpop.f32.mrf.mxu0
    %v2265 = vadd.f32 %v217, %v2264
    %v2266 = vpop.f32.mrf.mxu0
    %v2267 = vadd.f32 %v222, %v2266
    %v2268 = vpop.f32.mrf.mxu0
    %v2269 = vadd.f32 %v222, %v2268
    %2270 = vdwg.mxu0
    %2271 = vmatprep.subr.bf16.mxu0 0
    %2272 = vmatpush1.bf16.msra.mxu0 0
    %2273 = vmatprep.subr.bf16.mxu0 %v2163
    %2274 = vmatpush1.bf16.msra.mxu0 %v2160
    %2275 = vmatprep.subr.bf16.mxu0 %v2104
    %2276 = vmatpush1.bf16.msra.mxu0 %v2103
    %2277 = vmatprep.subr.bf16.mxu0 %v2098
    %2278 = vmatpush1.bf16.msra.mxu0 %v2097
    %2279 = vmatprep.subr.bf16.mxu0 %v2092
    %2280 = vmatpush1.bf16.msra.mxu0 %v2091
    %2281 = vmatprep.subr.bf16.mxu0 %v2086
    %2282 = vmatpush1.bf16.msra.mxu0 %v2085
    %2283 = vmatprep.subr.bf16.mxu0 %v2080
    %2284 = vmatpush1.bf16.msra.mxu0 %v2079
    %2285 = vmatprep.subr.bf16.mxu0 %v2074
    %2286 = vmatpush1.bf16.msra.mxu0 %v2073
    %2287 = vmatprep.subr.bf16.mxu0 0
    %2288 = vmatpush2.bf16.msra.mxu0 0
    %2289 = vmatprep.subr.bf16.mxu0 0
    %2290 = vmatpush2.bf16.msra.mxu0 0
    %2291 = vmatprep.subr.bf16.mxu0 0
    %2292 = vmatpush2.bf16.msra.mxu0 0
    %2293 = vmatprep.subr.bf16.mxu0 0
    %2294 = vmatpush2.bf16.msra.mxu0 0
    %2295 = vmatprep.subr.bf16.mxu0 0
    %2296 = vmatpush2.bf16.msra.mxu0 0
    %2297 = vmatprep.subr.bf16.mxu0 0
    %2298 = vmatpush2.bf16.msra.mxu0 0
    %2299 = vmatprep.subr.bf16.mxu0 0
    %2300 = vmatpush2.bf16.msra.mxu0 0
    %2301 = vmatprep.subr.bf16.mxu0 0
    %2302 = vmatpush2.bf16.msra.mxu0 0
    %2303 = vmatprep.mubr.bf16.mxu0 0
    %2304 = vmatmul.mubr.bf16.gmra.mxu0 %v431
    %v2305 = vpop.f32.mrf.mxu0
    %v2306 = vadd.f32 %v207, %v2305
    %v2307 = vpop.f32.mrf.mxu0
    %v2308 = vadd.f32 %v207, %v2307
    %v2309 = vpop.f32.mrf.mxu0
    %v2310 = vadd.f32 %v212, %v2309
    %v2311 = vpop.f32.mrf.mxu0
    %v2312 = vadd.f32 %v212, %v2311
    %2313 = vmatprep.mubr.bf16.mxu0 0
    %2314 = vmatmul.mubr.bf16.gmra.mxu0 %v434
    %v2315 = vpop.f32.mrf.mxu0
    %v2316 = vadd.f32 %v217, %v2315
    %v2317 = vpop.f32.mrf.mxu0
    %v2318 = vadd.f32 %v217, %v2317
    %v2319 = vpop.f32.mrf.mxu0
    %v2320 = vadd.f32 %v222, %v2319
    %v2321 = vpop.f32.mrf.mxu0
    %v2322 = vadd.f32 %v222, %v2321
    %2323 = vdwg.mxu0
    %vm2324 = vcmp.gt.f32.partialorder %v2200, 0.0
    %vm2325 = vcmp.gt.f32.partialorder %v2202, 0.0
    %vm2326 = vcmp.gt.f32.partialorder %v2253, 0.0
    %vm2327 = vcmp.gt.f32.partialorder %v2255, 0.0
    %vm2328 = vcmp.gt.f32.partialorder %v2306, 0.0
    %vm2329 = vcmp.gt.f32.partialorder %v2308, 0.0
    %vm2330 = vcmp.gt.f32.partialorder %v2204, 0.0
    %vm2331 = vcmp.gt.f32.partialorder %v2206, 0.0
    %vm2332 = vcmp.gt.f32.partialorder %v2257, 0.0
    %vm2333 = vcmp.gt.f32.partialorder %v2259, 0.0
    %vm2334 = vcmp.gt.f32.partialorder %v2310, 0.0
    %vm2335 = vcmp.gt.f32.partialorder %v2312, 0.0
    %vm2336 = vcmp.gt.f32.partialorder %v2210, 0.0
    %vm2337 = vcmp.gt.f32.partialorder %v2212, 0.0
    %vm2338 = vcmp.gt.f32.partialorder %v2263, 0.0
    %vm2339 = vcmp.gt.f32.partialorder %v2265, 0.0
    %vm2340 = vcmp.gt.f32.partialorder %v2316, 0.0
    %vm2341 = vcmp.gt.f32.partialorder %v2318, 0.0
    %vm2342 = vcmp.gt.f32.partialorder %v2214, 0.0
    %vm2343 = vcmp.gt.f32.partialorder %v2216, 0.0
    %vm2344 = vcmp.gt.f32.partialorder %v2267, 0.0
    %vm2345 = vcmp.gt.f32.partialorder %v2269, 0.0
    %vm2346 = vcmp.gt.f32.partialorder %v2320, 0.0
    %vm2347 = vcmp.gt.f32.partialorder %v2322, 0.0
    %v2348 = vmin.f32 %v2200, 0.0
    %v2349 = vmin.f32 %v2202, 0.0
    %v2350 = vmin.f32 %v2253, 0.0
    %v2351 = vmin.f32 %v2255, 0.0
    %v2352 = vmin.f32 %v2306, 0.0
    %v2353 = vmin.f32 %v2308, 0.0
    %v2354 = vmin.f32 %v2204, 0.0
    %v2355 = vmin.f32 %v2206, 0.0
    %v2356 = vmin.f32 %v2257, 0.0
    %v2357 = vmin.f32 %v2259, 0.0
    %v2358 = vmin.f32 %v2310, 0.0
    %v2359 = vmin.f32 %v2312, 0.0
    %v2360 = vmin.f32 %v2210, 0.0
    %v2361 = vmin.f32 %v2212, 0.0
    %v2362 = vmin.f32 %v2263, 0.0
    %v2363 = vmin.f32 %v2265, 0.0
    %v2364 = vmin.f32 %v2316, 0.0
    %v2365 = vmin.f32 %v2318, 0.0
    %v2366 = vmin.f32 %v2214, 0.0
    %v2367 = vmin.f32 %v2216, 0.0
    %v2368 = vmin.f32 %v2267, 0.0
    %v2369 = vmin.f32 %v2269, 0.0
    %v2370 = vmin.f32 %v2320, 0.0
    %v2371 = vmin.f32 %v2322, 0.0
    %v2372 = vmul.f32 %v2348, 1.442695
    %v2373 = vpow.pop %v2372
    %v2374 = vmul.f32 %v2349, 1.442695
    %v2375 = vpow.pop %v2374
    %v2376 = vmul.f32 %v2350, 1.442695
    %v2377 = vpow.pop %v2376
    %v2378 = vmul.f32 %v2351, 1.442695
    %v2379 = vpow.pop %v2378
    %v2380 = vmul.f32 %v2352, 1.442695
    %v2381 = vpow.pop %v2380
    %v2382 = vmul.f32 %v2353, 1.442695
    %v2383 = vpow.pop %v2382
    %v2384 = vmul.f32 %v2354, 1.442695
    %v2385 = vpow.pop %v2384
    %v2386 = vmul.f32 %v2355, 1.442695
    %v2387 = vpow.pop %v2386
    %v2388 = vmul.f32 %v2356, 1.442695
    %v2389 = vpow.pop %v2388
    %v2390 = vmul.f32 %v2357, 1.442695
    %v2391 = vpow.pop %v2390
    %v2392 = vmul.f32 %v2358, 1.442695
    %v2393 = vpow.pop %v2392
    %v2394 = vmul.f32 %v2359, 1.442695
    %v2395 = vpow.pop %v2394
    %v2396 = vmul.f32 %v2360, 1.442695
    %v2397 = vpow.pop %v2396
    %v2398 = vmul.f32 %v2361, 1.442695
    %v2399 = vpow.pop %v2398
    %v2400 = vmul.f32 %v2362, 1.442695
    %v2401 = vpow.pop %v2400
    %v2402 = vmul.f32 %v2363, 1.442695
    %v2403 = vpow.pop %v2402
    %v2404 = vmul.f32 %v2364, 1.442695
    %v2405 = vpow.pop %v2404
    %v2406 = vmul.f32 %v2365, 1.442695
    %v2407 = vpow.pop %v2406
    %v2408 = vmul.f32 %v2366, 1.442695
    %v2409 = vpow.pop %v2408
    %v2410 = vmul.f32 %v2367, 1.442695
    %v2411 = vpow.pop %v2410
    %v2412 = vmul.f32 %v2368, 1.442695
    %v2413 = vpow.pop %v2412
    %v2414 = vmul.f32 %v2369, 1.442695
    %v2415 = vpow.pop %v2414
    %v2416 = vmul.f32 %v2370, 1.442695
    %v2417 = vpow.pop %v2416
    %v2418 = vmul.f32 %v2371, 1.442695
    %v2419 = vpow.pop %v2418
    %v2420 = vsub.f32 %v2373, 1.0
    %v2421 = vsub.f32 %v2375, 1.0
    %v2422 = vsub.f32 %v2377, 1.0
    %v2423 = vsub.f32 %v2379, 1.0
    %v2424 = vsub.f32 %v2381, 1.0
    %v2425 = vsub.f32 %v2383, 1.0
    %v2426 = vsub.f32 %v2385, 1.0
    %v2427 = vsub.f32 %v2387, 1.0
    %v2428 = vsub.f32 %v2389, 1.0
    %v2429 = vsub.f32 %v2391, 1.0
    %v2430 = vsub.f32 %v2393, 1.0
    %v2431 = vsub.f32 %v2395, 1.0
    %v2432 = vsub.f32 %v2397, 1.0
    %v2433 = vsub.f32 %v2399, 1.0
    %v2434 = vsub.f32 %v2401, 1.0
    %v2435 = vsub.f32 %v2403, 1.0
    %v2436 = vsub.f32 %v2405, 1.0
    %v2437 = vsub.f32 %v2407, 1.0
    %v2438 = vsub.f32 %v2409, 1.0
    %v2439 = vsub.f32 %v2411, 1.0
    %v2440 = vsub.f32 %v2413, 1.0
    %v2441 = vsub.f32 %v2415, 1.0
    %v2442 = vsub.f32 %v2417, 1.0
    %v2443 = vsub.f32 %v2419, 1.0
    %v2444 = vsel %vm2324, %v2200, %v2420
    %v2445 = vsel %vm2325, %v2202, %v2421
    %v2446 = vsel %vm2326, %v2253, %v2422
    %v2447 = vsel %vm2327, %v2255, %v2423
    %v2448 = vsel %vm2328, %v2306, %v2424
    %v2449 = vsel %vm2329, %v2308, %v2425
    %v2450 = vsel %vm2330, %v2204, %v2426
    %v2451 = vsel %vm2331, %v2206, %v2427
    %v2452 = vsel %vm2332, %v2257, %v2428
    %v2453 = vsel %vm2333, %v2259, %v2429
    %v2454 = vsel %vm2334, %v2310, %v2430
    %v2455 = vsel %vm2335, %v2312, %v2431
    %v2456 = vsel %vm2336, %v2210, %v2432
    %v2457 = vsel %vm2337, %v2212, %v2433
    %v2458 = vsel %vm2338, %v2263, %v2434
    %v2459 = vsel %vm2339, %v2265, %v2435
    %v2460 = vsel %vm2340, %v2316, %v2436
    %v2461 = vsel %vm2341, %v2318, %v2437
    %v2462 = vsel %vm2342, %v2214, %v2438
    %v2463 = vsel %vm2343, %v2216, %v2439
    %v2464 = vsel %vm2344, %v2267, %v2440
    %v2465 = vsel %vm2345, %v2269, %v2441
    %v2466 = vsel %vm2346, %v2320, %v2442
    %v2467 = vsel %vm2347, %v2322, %v2443
    %v2468 = vpack.c.bf16 %v2450, %v2444
    %v2469 = vpack.c.bf16 %v2451, %v2445
    %v2470 = vpack.c.bf16 %v2452, %v2446
    %v2471 = vpack.c.bf16 %v2453, %v2447
    %v2472 = vpack.c.bf16 %v2454, %v2448
    %v2473 = vpack.c.bf16 %v2455, %v2449
    %v2474 = vpack.c.bf16 %v2462, %v2456
    %v2475 = vpack.c.bf16 %v2463, %v2457
    %v2476 = vpack.c.bf16 %v2464, %v2458
    %v2477 = vpack.c.bf16 %v2465, %v2459
    %v2478 = vpack.c.bf16 %v2466, %v2460
    %v2479 = vpack.c.bf16 %v2467, %v2461
    %v2481 = vsel %vm1238, %v2473, 0
    %v2484 = vsel %vm1238, %v2479, 0
    %2486 = vmatprep.subr.bf16.mxu0 %v1067
    %2487 = vmatpush1.bf16.msra.mxu0 %v1066
    %2488 = vmatprep.subr.bf16.mxu0 %v1065
    %2489 = vmatpush1.bf16.msra.mxu0 %v1064
    %2490 = vmatprep.subr.bf16.mxu0 %v1063
    %2491 = vmatpush1.bf16.msra.mxu0 %v1062
    %2492 = vmatprep.subr.bf16.mxu0 %v1061
    %2493 = vmatpush1.bf16.msra.mxu0 %v1060
    %2494 = vmatprep.subr.bf16.mxu0 %v1059
    %2495 = vmatpush1.bf16.msra.mxu0 %v1058
    %2496 = vmatprep.subr.bf16.mxu0 %v1057
    %2497 = vmatpush1.bf16.msra.mxu0 %v1056
    %2498 = vmatprep.subr.bf16.mxu0 %v1055
    %2499 = vmatpush1.bf16.msra.mxu0 %v1054
    %2500 = vmatprep.subr.bf16.mxu0 %v1053
    %2501 = vmatpush1.bf16.msra.mxu0 %v1052
    %2502 = vmatprep.subr.bf16.mxu0 %v1083
    %2503 = vmatpush2.bf16.msra.mxu0 %v1082
    %2504 = vmatprep.subr.bf16.mxu0 %v1081
    %2505 = vmatpush2.bf16.msra.mxu0 %v1080
    %2506 = vmatprep.subr.bf16.mxu0 %v1079
    %2507 = vmatpush2.bf16.msra.mxu0 %v1078
    %2508 = vmatprep.subr.bf16.mxu0 %v1077
    %2509 = vmatpush2.bf16.msra.mxu0 %v1076
    %2510 = vmatprep.subr.bf16.mxu0 %v1075
    %2511 = vmatpush2.bf16.msra.mxu0 %v1074
    %2512 = vmatprep.subr.bf16.mxu0 %v1073
    %2513 = vmatpush2.bf16.msra.mxu0 %v1072
    %2514 = vmatprep.subr.bf16.mxu0 %v1071
    %2515 = vmatpush2.bf16.msra.mxu0 %v1070
    %2516 = vmatprep.subr.bf16.mxu0 %v1069
    %2517 = vmatpush2.bf16.msra.mxu0 %v1068
    %2518 = vmatprep.mubr.bf16.mxu0 %v2469
    %2519 = vmatmul.mubr.bf16.gmra.mxu0 %v2468
    %v2520 = vpop.f32.mrf.mxu0
    %v2521 = vadd.f32 0.0, %v2520
    %v2522 = vpop.f32.mrf.mxu0
    %v2523 = vadd.f32 0.0, %v2522
    %v2524 = vpop.f32.mrf.mxu0
    %v2525 = vadd.f32 0.0, %v2524
    %v2526 = vpop.f32.mrf.mxu0
    %v2527 = vadd.f32 0.0, %v2526
    %2528 = vmatprep.mubr.bf16.mxu0 %v2475
    %2529 = vmatmul.mubr.bf16.gmra.mxu0 %v2474
    %v2530 = vpop.f32.mrf.mxu0
    %v2531 = vadd.f32 0.0, %v2530
    %v2532 = vpop.f32.mrf.mxu0
    %v2533 = vadd.f32 0.0, %v2532
    %v2534 = vpop.f32.mrf.mxu0
    %v2535 = vadd.f32 0.0, %v2534
    %v2536 = vpop.f32.mrf.mxu0
    %v2537 = vadd.f32 0.0, %v2536
    %2538 = vdwg.mxu0
    %2539 = vmatprep.subr.bf16.mxu0 %v1099
    %2540 = vmatpush1.bf16.msra.mxu0 %v1098
    %2541 = vmatprep.subr.bf16.mxu0 %v1097
    %2542 = vmatpush1.bf16.msra.mxu0 %v1096
    %2543 = vmatprep.subr.bf16.mxu0 %v1095
    %2544 = vmatpush1.bf16.msra.mxu0 %v1094
    %2545 = vmatprep.subr.bf16.mxu0 %v1093
    %2546 = vmatpush1.bf16.msra.mxu0 %v1092
    %2547 = vmatprep.subr.bf16.mxu0 %v1091
    %2548 = vmatpush1.bf16.msra.mxu0 %v1090
    %2549 = vmatprep.subr.bf16.mxu0 %v1089
    %2550 = vmatpush1.bf16.msra.mxu0 %v1088
    %2551 = vmatprep.subr.bf16.mxu0 %v1087
    %2552 = vmatpush1.bf16.msra.mxu0 %v1086
    %2553 = vmatprep.subr.bf16.mxu0 %v1085
    %2554 = vmatpush1.bf16.msra.mxu0 %v1084
    %2555 = vmatprep.subr.bf16.mxu0 %v1115
    %2556 = vmatpush2.bf16.msra.mxu0 %v1114
    %2557 = vmatprep.subr.bf16.mxu0 %v1113
    %2558 = vmatpush2.bf16.msra.mxu0 %v1112
    %2559 = vmatprep.subr.bf16.mxu0 %v1111
    %2560 = vmatpush2.bf16.msra.mxu0 %v1110
    %2561 = vmatprep.subr.bf16.mxu0 %v1109
    %2562 = vmatpush2.bf16.msra.mxu0 %v1108
    %2563 = vmatprep.subr.bf16.mxu0 %v1107
    %2564 = vmatpush2.bf16.msra.mxu0 %v1106
    %2565 = vmatprep.subr.bf16.mxu0 %v1105
    %2566 = vmatpush2.bf16.msra.mxu0 %v1104
    %2567 = vmatprep.subr.bf16.mxu0 %v1103
    %2568 = vmatpush2.bf16.msra.mxu0 %v1102
    %2569 = vmatprep.subr.bf16.mxu0 %v1101
    %2570 = vmatpush2.bf16.msra.mxu0 %v1100
    %2571 = vmatprep.mubr.bf16.mxu0 %v2471
    %2572 = vmatmul.mubr.bf16.gmra.mxu0 %v2470
    %v2573 = vpop.f32.mrf.mxu0
    %v2574 = vadd.f32 %v2521, %v2573
    %v2575 = vpop.f32.mrf.mxu0
    %v2576 = vadd.f32 %v2523, %v2575
    %v2577 = vpop.f32.mrf.mxu0
    %v2578 = vadd.f32 %v2525, %v2577
    %v2579 = vpop.f32.mrf.mxu0
    %v2580 = vadd.f32 %v2527, %v2579
    %2581 = vmatprep.mubr.bf16.mxu0 %v2477
    %2582 = vmatmul.mubr.bf16.gmra.mxu0 %v2476
    %v2583 = vpop.f32.mrf.mxu0
    %v2584 = vadd.f32 %v2531, %v2583
    %v2585 = vpop.f32.mrf.mxu0
    %v2586 = vadd.f32 %v2533, %v2585
    %v2587 = vpop.f32.mrf.mxu0
    %v2588 = vadd.f32 %v2535, %v2587
    %v2589 = vpop.f32.mrf.mxu0
    %v2590 = vadd.f32 %v2537, %v2589
    %2591 = vdwg.mxu0
    %2592 = vmatprep.subr.bf16.mxu0 %v1131
    %2593 = vmatpush1.bf16.msra.mxu0 %v1130
    %2594 = vmatprep.subr.bf16.mxu0 %v1129
    %2595 = vmatpush1.bf16.msra.mxu0 %v1128
    %2596 = vmatprep.subr.bf16.mxu0 %v1127
    %2597 = vmatpush1.bf16.msra.mxu0 %v1126
    %2598 = vmatprep.subr.bf16.mxu0 %v1125
    %2599 = vmatpush1.bf16.msra.mxu0 %v1124
    %2600 = vmatprep.subr.bf16.mxu0 %v1123
    %2601 = vmatpush1.bf16.msra.mxu0 %v1122
    %2602 = vmatprep.subr.bf16.mxu0 %v1121
    %2603 = vmatpush1.bf16.msra.mxu0 %v1120
    %2604 = vmatprep.subr.bf16.mxu0 %v1119
    %2605 = vmatpush1.bf16.msra.mxu0 %v1118
    %2606 = vmatprep.subr.bf16.mxu0 %v1117
    %2607 = vmatpush1.bf16.msra.mxu0 %v1116
    %2608 = vmatprep.subr.bf16.mxu0 0
    %2609 = vmatpush2.bf16.msra.mxu0 0
    %2610 = vmatprep.subr.bf16.mxu0 %v1250
    %2611 = vmatpush2.bf16.msra.mxu0 %v1247
    %2612 = vmatprep.subr.bf16.mxu0 %v1143
    %2613 = vmatpush2.bf16.msra.mxu0 %v1142
    %2614 = vmatprep.subr.bf16.mxu0 %v1141
    %2615 = vmatpush2.bf16.msra.mxu0 %v1140
    %2616 = vmatprep.subr.bf16.mxu0 %v1139
    %2617 = vmatpush2.bf16.msra.mxu0 %v1138
    %2618 = vmatprep.subr.bf16.mxu0 %v1137
    %2619 = vmatpush2.bf16.msra.mxu0 %v1136
    %2620 = vmatprep.subr.bf16.mxu0 %v1135
    %2621 = vmatpush2.bf16.msra.mxu0 %v1134
    %2622 = vmatprep.subr.bf16.mxu0 %v1133
    %2623 = vmatpush2.bf16.msra.mxu0 %v1132
    %2624 = vmatprep.mubr.bf16.mxu0 %v2481
    %2625 = vmatmul.mubr.bf16.gmra.mxu0 %v2472
    %v2626 = vpop.f32.mrf.mxu0
    %v2627 = vadd.f32 %v2574, %v2626
    %v2628 = vpop.f32.mrf.mxu0
    %v2629 = vadd.f32 %v2576, %v2628
    %v2630 = vpop.f32.mrf.mxu0
    %v2631 = vadd.f32 %v2578, %v2630
    %v2632 = vpop.f32.mrf.mxu0
    %v2633 = vadd.f32 %v2580, %v2632
    %2634 = vmatprep.mubr.bf16.mxu0 %v2484
    %2635 = vmatmul.mubr.bf16.gmra.mxu0 %v2478
    %v2636 = vpop.f32.mrf.mxu0
    %v2637 = vadd.f32 %v2584, %v2636
    %v2638 = vpop.f32.mrf.mxu0
    %v2639 = vadd.f32 %v2586, %v2638
    %v2640 = vpop.f32.mrf.mxu0
    %v2641 = vadd.f32 %v2588, %v2640
    %v2642 = vpop.f32.mrf.mxu0
    %v2643 = vadd.f32 %v2590, %v2642
    %2644 = vdwg.mxu0
    %v2645 = vpack.c.bf16 %v2631, %v2627
    %v2646 = vpack.c.bf16 %v2633, %v2629
    %v2647 = vpack.c.bf16 %v2641, %v2637
    %v2648 = vpack.c.bf16 %v2643, %v2639
    %2653 = vrot.lane.b32.xlu0 %v2645, 127
    %v2654 = vpop.permute.xlu0 %2653
    %2655 = vrot.lane.b32.xlu0 %v2646, 127
    %v2656 = vpop.permute.xlu0 %2655
    %2657 = vrot.lane.b32.xlu0 %v2647, 127
    %v2658 = vpop.permute.xlu0 %2657
    %2659 = vrot.lane.b32.xlu0 %v2648, 127
    %v2660 = vpop.permute.xlu0 %2659
    %v2661 = vsel %vm1427, %v2654, %v2656
    %v2662 = vsel %vm1427, %v2658, %v2660
    %2667 = vrot.lane.b32.xlu0 %v2645, 126
    %v2668 = vpop.permute.xlu0 %2667
    %2669 = vrot.lane.b32.xlu0 %v2646, 126
    %v2670 = vpop.permute.xlu0 %2669
    %2671 = vrot.lane.b32.xlu0 %v2647, 126
    %v2672 = vpop.permute.xlu0 %2671
    %2673 = vrot.lane.b32.xlu0 %v2648, 126
    %v2674 = vpop.permute.xlu0 %2673
    %v2675 = vsel %vm1442, %v2668, %v2670
    %v2676 = vsel %vm1442, %v2672, %v2674
    %2681 = vrot.lane.b32.xlu0 %v2645, 125
    %v2682 = vpop.permute.xlu0 %2681
    %2683 = vrot.lane.b32.xlu0 %v2646, 125
    %v2684 = vpop.permute.xlu0 %2683
    %2685 = vrot.lane.b32.xlu0 %v2647, 125
    %v2686 = vpop.permute.xlu0 %2685
    %2687 = vrot.lane.b32.xlu0 %v2648, 125
    %v2688 = vpop.permute.xlu0 %2687
    %v2689 = vsel %vm1457, %v2682, %v2684
    %v2690 = vsel %vm1457, %v2686, %v2688
    %2695 = vrot.lane.b32.xlu0 %v2645, 124
    %v2696 = vpop.permute.xlu0 %2695
    %2697 = vrot.lane.b32.xlu0 %v2646, 124
    %v2698 = vpop.permute.xlu0 %2697
    %2699 = vrot.lane.b32.xlu0 %v2647, 124
    %v2700 = vpop.permute.xlu0 %2699
    %2701 = vrot.lane.b32.xlu0 %v2648, 124
    %v2702 = vpop.permute.xlu0 %2701
    %v2703 = vsel %vm1472, %v2696, %v2698
    %v2704 = vsel %vm1472, %v2700, %v2702
    %2709 = vrot.lane.b32.xlu0 %v2645, 123
    %v2710 = vpop.permute.xlu0 %2709
    %2711 = vrot.lane.b32.xlu0 %v2646, 123
    %v2712 = vpop.permute.xlu0 %2711
    %2713 = vrot.lane.b32.xlu0 %v2647, 123
    %v2714 = vpop.permute.xlu0 %2713
    %2715 = vrot.lane.b32.xlu0 %v2648, 123
    %v2716 = vpop.permute.xlu0 %2715
    %v2717 = vsel %vm1487, %v2710, %v2712
    %v2718 = vsel %vm1487, %v2714, %v2716
    %2723 = vrot.lane.b32.xlu0 %v2645, 122
    %v2724 = vpop.permute.xlu0 %2723
    %2725 = vrot.lane.b32.xlu0 %v2646, 122
    %v2726 = vpop.permute.xlu0 %2725
    %2727 = vrot.lane.b32.xlu0 %v2647, 122
    %v2728 = vpop.permute.xlu0 %2727
    %2729 = vrot.lane.b32.xlu0 %v2648, 122
    %v2730 = vpop.permute.xlu0 %2729
    %v2731 = vsel %vm1502, %v2724, %v2726
    %v2732 = vsel %vm1502, %v2728, %v2730
    %2737 = vrot.lane.b32.xlu0 %v2645, 121
    %v2738 = vpop.permute.xlu0 %2737
    %2739 = vrot.lane.b32.xlu0 %v2646, 121
    %v2740 = vpop.permute.xlu0 %2739
    %2741 = vrot.lane.b32.xlu0 %v2647, 121
    %v2742 = vpop.permute.xlu0 %2741
    %2743 = vrot.lane.b32.xlu0 %v2648, 121
    %v2744 = vpop.permute.xlu0 %2743
    %v2745 = vsel %vm1517, %v2738, %v2740
    %v2746 = vsel %vm1517, %v2742, %v2744
    %2751 = vrot.lane.b32.xlu0 %v2645, 120
    %v2752 = vpop.permute.xlu0 %2751
    %2753 = vrot.lane.b32.xlu0 %v2646, 120
    %v2754 = vpop.permute.xlu0 %2753
    %2755 = vrot.lane.b32.xlu0 %v2647, 120
    %v2756 = vpop.permute.xlu0 %2755
    %2757 = vrot.lane.b32.xlu0 %v2648, 120
    %v2758 = vpop.permute.xlu0 %2757
    %v2759 = vsel %vm1532, %v2752, %v2754
    %v2760 = vsel %vm1532, %v2756, %v2758
    %2765 = vrot.lane.b32.xlu0 %v2645, 119
    %v2766 = vpop.permute.xlu0 %2765
    %2767 = vrot.lane.b32.xlu0 %v2646, 119
    %v2768 = vpop.permute.xlu0 %2767
    %2769 = vrot.lane.b32.xlu0 %v2647, 119
    %v2770 = vpop.permute.xlu0 %2769
    %2771 = vrot.lane.b32.xlu0 %v2648, 119
    %v2772 = vpop.permute.xlu0 %2771
    %v2773 = vsel %vm1547, %v2766, %v2768
    %v2774 = vsel %vm1547, %v2770, %v2772
    %2779 = vrot.lane.b32.xlu0 %v2645, 118
    %v2780 = vpop.permute.xlu0 %2779
    %2781 = vrot.lane.b32.xlu0 %v2646, 118
    %v2782 = vpop.permute.xlu0 %2781
    %2783 = vrot.lane.b32.xlu0 %v2647, 118
    %v2784 = vpop.permute.xlu0 %2783
    %2785 = vrot.lane.b32.xlu0 %v2648, 118
    %v2786 = vpop.permute.xlu0 %2785
    %v2787 = vsel %vm1562, %v2780, %v2782
    %v2788 = vsel %vm1562, %v2784, %v2786
    %2793 = vrot.lane.b32.xlu0 %v2645, 117
    %v2794 = vpop.permute.xlu0 %2793
    %2795 = vrot.lane.b32.xlu0 %v2646, 117
    %v2796 = vpop.permute.xlu0 %2795
    %2797 = vrot.lane.b32.xlu0 %v2647, 117
    %v2798 = vpop.permute.xlu0 %2797
    %2799 = vrot.lane.b32.xlu0 %v2648, 117
    %v2800 = vpop.permute.xlu0 %2799
    %v2801 = vsel %vm1577, %v2794, %v2796
    %v2802 = vsel %vm1577, %v2798, %v2800
    %2807 = vrot.lane.b32.xlu0 %v2645, 116
    %v2808 = vpop.permute.xlu0 %2807
    %2809 = vrot.lane.b32.xlu0 %v2646, 116
    %v2810 = vpop.permute.xlu0 %2809
    %2811 = vrot.lane.b32.xlu0 %v2647, 116
    %v2812 = vpop.permute.xlu0 %2811
    %2813 = vrot.lane.b32.xlu0 %v2648, 116
    %v2814 = vpop.permute.xlu0 %2813
    %v2815 = vsel %vm1592, %v2808, %v2810
    %v2816 = vsel %vm1592, %v2812, %v2814
    %2821 = vrot.lane.b32.xlu0 %v2645, 115
    %v2822 = vpop.permute.xlu0 %2821
    %2823 = vrot.lane.b32.xlu0 %v2646, 115
    %v2824 = vpop.permute.xlu0 %2823
    %2825 = vrot.lane.b32.xlu0 %v2647, 115
    %v2826 = vpop.permute.xlu0 %2825
    %2827 = vrot.lane.b32.xlu0 %v2648, 115
    %v2828 = vpop.permute.xlu0 %2827
    %v2829 = vsel %vm1607, %v2822, %v2824
    %v2830 = vsel %vm1607, %v2826, %v2828
    %2835 = vrot.lane.b32.xlu0 %v2645, 114
    %v2836 = vpop.permute.xlu0 %2835
    %2837 = vrot.lane.b32.xlu0 %v2646, 114
    %v2838 = vpop.permute.xlu0 %2837
    %2839 = vrot.lane.b32.xlu0 %v2647, 114
    %v2840 = vpop.permute.xlu0 %2839
    %2841 = vrot.lane.b32.xlu0 %v2648, 114
    %v2842 = vpop.permute.xlu0 %2841
    %v2843 = vsel %vm1622, %v2836, %v2838
    %v2844 = vsel %vm1622, %v2840, %v2842
    %2849 = vmatprep.subr.bf16.mxu0 %v2688
    %2850 = vmatpush1.bf16.msra.mxu0 %v2690
    %2851 = vmatprep.subr.bf16.mxu0 %v2684
    %2852 = vmatpush1.bf16.msra.mxu0 %v2689
    %2853 = vmatprep.subr.bf16.mxu0 %v2674
    %2854 = vmatpush1.bf16.msra.mxu0 %v2676
    %2855 = vmatprep.subr.bf16.mxu0 %v2670
    %2856 = vmatpush1.bf16.msra.mxu0 %v2675
    %2857 = vmatprep.subr.bf16.mxu0 %v2660
    %2858 = vmatpush1.bf16.msra.mxu0 %v2662
    %2859 = vmatprep.subr.bf16.mxu0 %v2656
    %2860 = vmatpush1.bf16.msra.mxu0 %v2661
    %2861 = vmatprep.subr.bf16.mxu0 %v2648
    %2862 = vmatpush1.bf16.msra.mxu0 %v2647
    %2863 = vmatprep.subr.bf16.mxu0 %v2646
    %2864 = vmatpush1.bf16.msra.mxu0 %v2645
    %2865 = vmatprep.subr.bf16.mxu0 %v2744
    %2866 = vmatpush2.bf16.msra.mxu0 %v2746
    %2867 = vmatprep.subr.bf16.mxu0 %v2740
    %2868 = vmatpush2.bf16.msra.mxu0 %v2745
    %2869 = vmatprep.subr.bf16.mxu0 %v2730
    %2870 = vmatpush2.bf16.msra.mxu0 %v2732
    %2871 = vmatprep.subr.bf16.mxu0 %v2726
    %2872 = vmatpush2.bf16.msra.mxu0 %v2731
    %2873 = vmatprep.subr.bf16.mxu0 %v2716
    %2874 = vmatpush2.bf16.msra.mxu0 %v2718
    %2875 = vmatprep.subr.bf16.mxu0 %v2712
    %2876 = vmatpush2.bf16.msra.mxu0 %v2717
    %2877 = vmatprep.subr.bf16.mxu0 %v2702
    %2878 = vmatpush2.bf16.msra.mxu0 %v2704
    %2879 = vmatprep.subr.bf16.mxu0 %v2698
    %2880 = vmatpush2.bf16.msra.mxu0 %v2703
    %2881 = vmatprep.mubr.bf16.mxu0 %v1674
    %2882 = vmatmul.mubr.bf16.gmra.mxu0 %v1673
    %v2883 = vpop.f32.mrf.mxu0
    %v2884 = vadd.f32 %v1632, %v2883
    %v2885 = vpop.f32.mrf.mxu0
    %v2886 = vadd.f32 %v1632, %v2885
    %v2887 = vpop.f32.mrf.mxu0
    %v2888 = vadd.f32 %v1637, %v2887
    %v2889 = vpop.f32.mrf.mxu0
    %v2890 = vadd.f32 %v1637, %v2889
    %2891 = vmatprep.mubr.bf16.mxu0 %v1678
    %2892 = vmatmul.mubr.bf16.gmra.mxu0 %v1677
    %v2893 = vpop.f32.mrf.mxu0
    %v2894 = vadd.f32 %v1642, %v2893
    %v2895 = vpop.f32.mrf.mxu0
    %v2896 = vadd.f32 %v1642, %v2895
    %v2897 = vpop.f32.mrf.mxu0
    %v2898 = vadd.f32 %v1647, %v2897
    %v2899 = vpop.f32.mrf.mxu0
    %v2900 = vadd.f32 %v1647, %v2899
    %2901 = vdwg.mxu0
    %2902 = vmatprep.subr.bf16.mxu0 %v2800
    %2903 = vmatpush1.bf16.msra.mxu0 %v2802
    %2904 = vmatprep.subr.bf16.mxu0 %v2796
    %2905 = vmatpush1.bf16.msra.mxu0 %v2801
    %2906 = vmatprep.subr.bf16.mxu0 %v2786
    %2907 = vmatpush1.bf16.msra.mxu0 %v2788
    %2908 = vmatprep.subr.bf16.mxu0 %v2782
    %2909 = vmatpush1.bf16.msra.mxu0 %v2787
    %2910 = vmatprep.subr.bf16.mxu0 %v2772
    %2911 = vmatpush1.bf16.msra.mxu0 %v2774
    %2912 = vmatprep.subr.bf16.mxu0 %v2768
    %2913 = vmatpush1.bf16.msra.mxu0 %v2773
    %2914 = vmatprep.subr.bf16.mxu0 %v2758
    %2915 = vmatpush1.bf16.msra.mxu0 %v2760
    %2916 = vmatprep.subr.bf16.mxu0 %v2754
    %2917 = vmatpush1.bf16.msra.mxu0 %v2759
    %2918 = vmatprep.subr.bf16.mxu0 0
    %2919 = vmatpush2.bf16.msra.mxu0 0
    %2920 = vmatprep.subr.bf16.mxu0 0
    %2921 = vmatpush2.bf16.msra.mxu0 0
    %2922 = vmatprep.subr.bf16.mxu0 %v2842
    %2923 = vmatpush2.bf16.msra.mxu0 %v2844
    %2924 = vmatprep.subr.bf16.mxu0 %v2838
    %2925 = vmatpush2.bf16.msra.mxu0 %v2843
    %2926 = vmatprep.subr.bf16.mxu0 %v2828
    %2927 = vmatpush2.bf16.msra.mxu0 %v2830
    %2928 = vmatprep.subr.bf16.mxu0 %v2824
    %2929 = vmatpush2.bf16.msra.mxu0 %v2829
    %2930 = vmatprep.subr.bf16.mxu0 %v2814
    %2931 = vmatpush2.bf16.msra.mxu0 %v2816
    %2932 = vmatprep.subr.bf16.mxu0 %v2810
    %2933 = vmatpush2.bf16.msra.mxu0 %v2815
    %2934 = vmatprep.mubr.bf16.mxu0 %v1689
    %2935 = vmatmul.mubr.bf16.gmra.mxu0 %v1675
    %v2936 = vpop.f32.mrf.mxu0
    %v2937 = vadd.f32 %v2884, %v2936
    %v2938 = vpop.f32.mrf.mxu0
    %v2939 = vadd.f32 %v2886, %v2938
    %v2940 = vpop.f32.mrf.mxu0
    %v2941 = vadd.f32 %v2888, %v2940
    %v2942 = vpop.f32.mrf.mxu0
    %v2943 = vadd.f32 %v2890, %v2942
    %2944 = vmatprep.mubr.bf16.mxu0 %v1692
    %2945 = vmatmul.mubr.bf16.gmra.mxu0 %v1679
    %v2946 = vpop.f32.mrf.mxu0
    %v2947 = vadd.f32 %v2894, %v2946
    %v2948 = vpop.f32.mrf.mxu0
    %v2949 = vadd.f32 %v2896, %v2948
    %v2950 = vpop.f32.mrf.mxu0
    %v2951 = vadd.f32 %v2898, %v2950
    %v2952 = vpop.f32.mrf.mxu0
    %v2953 = vadd.f32 %v2900, %v2952
    %2954 = vdwg.mxu0
    %vm2955 = vcmp.gt.f32.partialorder %v2937, 0.0
    %vm2956 = vcmp.gt.f32.partialorder %v2939, 0.0
    %vm2957 = vcmp.gt.f32.partialorder %v2941, 0.0
    %vm2958 = vcmp.gt.f32.partialorder %v2943, 0.0
    %vm2959 = vcmp.gt.f32.partialorder %v2947, 0.0
    %vm2960 = vcmp.gt.f32.partialorder %v2949, 0.0
    %vm2961 = vcmp.gt.f32.partialorder %v2951, 0.0
    %vm2962 = vcmp.gt.f32.partialorder %v2953, 0.0
    %v2963 = vmin.f32 %v2937, 0.0
    %v2964 = vmin.f32 %v2939, 0.0
    %v2965 = vmin.f32 %v2941, 0.0
    %v2966 = vmin.f32 %v2943, 0.0
    %v2967 = vmin.f32 %v2947, 0.0
    %v2968 = vmin.f32 %v2949, 0.0
    %v2969 = vmin.f32 %v2951, 0.0
    %v2970 = vmin.f32 %v2953, 0.0
    %v2971 = vmul.f32 %v2963, 1.442695
    %v2972 = vpow.pop %v2971
    %v2973 = vmul.f32 %v2964, 1.442695
    %v2974 = vpow.pop %v2973
    %v2975 = vmul.f32 %v2965, 1.442695
    %v2976 = vpow.pop %v2975
    %v2977 = vmul.f32 %v2966, 1.442695
    %v2978 = vpow.pop %v2977
    %v2979 = vmul.f32 %v2967, 1.442695
    %v2980 = vpow.pop %v2979
    %v2981 = vmul.f32 %v2968, 1.442695
    %v2982 = vpow.pop %v2981
    %v2983 = vmul.f32 %v2969, 1.442695
    %v2984 = vpow.pop %v2983
    %v2985 = vmul.f32 %v2970, 1.442695
    %v2986 = vpow.pop %v2985
    %v2987 = vsub.f32 %v2972, 1.0
    %v2988 = vsub.f32 %v2974, 1.0
    %v2989 = vsub.f32 %v2976, 1.0
    %v2990 = vsub.f32 %v2978, 1.0
    %v2991 = vsub.f32 %v2980, 1.0
    %v2992 = vsub.f32 %v2982, 1.0
    %v2993 = vsub.f32 %v2984, 1.0
    %v2994 = vsub.f32 %v2986, 1.0
    %v2995 = vsel %vm2955, %v2937, %v2987
    %v2996 = vsel %vm2956, %v2939, %v2988
    %v2997 = vsel %vm2957, %v2941, %v2989
    %v2998 = vsel %vm2958, %v2943, %v2990
    %v2999 = vsel %vm2959, %v2947, %v2991
    %v3000 = vsel %vm2960, %v2949, %v2992
    %v3001 = vsel %vm2961, %v2951, %v2993
    %v3002 = vsel %vm2962, %v2953, %v2994
    %v3003 = vmul.f32 %v2995, %v145
    %v3004 = vmul.f32 %v2996, %v146
    %v3005 = vmul.f32 %v2997, %v147
    %v3006 = vmul.f32 %v2998, %v148
    %v3007 = vmul.f32 %v2999, %v149
    %v3008 = vmul.f32 %v3000, %v150
    %v3009 = vmul.f32 %v3001, %v151
    %v3010 = vmul.f32 %v3002, %v152
    %v3011 = vsel %vm1856, %v3004, 0.0
    %v3012 = vadd.f32 %v3003, %v3011
    %v3013 = vadd.f32 %v3012, %v3005
    %v3014 = vsel %vm1856, %v3006, 0.0
    %v3015 = vadd.f32 %v3013, %v3014
    %v3016 = vadd.f32 %v3015, %v3007
    %v3017 = vsel %vm1856, %v3008, 0.0
    %v3018 = vadd.f32 %v3016, %v3017
    %v3019 = vadd.f32 %v3018, %v3009
    %v3020 = vsel %vm1856, %v3010, 0.0
    %v3021 = vadd.f32 %v3019, %v3020
    %3022 = vadd.xlane.f32.xlu0 %v3021
    %v3023 = vpop.xlane.xlu0 %3022
    %v3024 = vrot.slane %v3023, 4
    %v3025 = vadd.f32 %v3023, %v3024
    %v3026 = vrot.slane %v3025, 2
    %v3027 = vadd.f32 %v3025, %v3026
    %v3028 = vrot.slane %v3027, 1
    %v3029 = vadd.f32 %v3027, %v3028
    %s3030 = vtos %v3029
    %v3031 = vmul.f32 %v2995, %v154
    %v3032 = vmul.f32 %v2996, %v155
    %v3033 = vmul.f32 %v2997, %v156
    %v3034 = vmul.f32 %v2998, %v157
    %v3035 = vmul.f32 %v2999, %v158
    %v3036 = vmul.f32 %v3000, %v159
    %v3037 = vmul.f32 %v3001, %v160
    %v3038 = vmul.f32 %v3002, %v161
    %v3039 = vsel %vm1856, %v3032, 0.0
    %v3040 = vadd.f32 %v3031, %v3039
    %v3041 = vadd.f32 %v3040, %v3033
    %v3042 = vsel %vm1856, %v3034, 0.0
    %v3043 = vadd.f32 %v3041, %v3042
    %v3044 = vadd.f32 %v3043, %v3035
    %v3045 = vsel %vm1856, %v3036, 0.0
    %v3046 = vadd.f32 %v3044, %v3045
    %v3047 = vadd.f32 %v3046, %v3037
    %v3048 = vsel %vm1856, %v3038, 0.0
    %v3049 = vadd.f32 %v3047, %v3048
    %3050 = vadd.xlane.f32.xlu0 %v3049
    %v3051 = vpop.xlane.xlu0 %3050
    %v3052 = vrot.slane %v3051, 4
    %v3053 = vadd.f32 %v3051, %v3052
    %v3054 = vrot.slane %v3053, 2
    %v3055 = vadd.f32 %v3053, %v3054
    %v3056 = vrot.slane %v3055, 1
    %v3057 = vadd.f32 %v3055, %v3056
    %s3058 = vtos %v3057
    %v3059 = vstv %s3058
    %v3060 = vsel %vm1906, %v3059, 0.0
    %v3061 = vstv %s3030
    %v3062 = vsel %vm1905, %v3061, %v3060
    %v3063 = vadd.f32 %v3062, %v162
    %v3065 = vrot.slane %v3063, 7
    %vm3067 = vcmask 1040384
    %v3068 = vsel %vm3067, %v1911, %v3065
    %3069 = vst [vmem:[#allocation2] sm:$0x3] %v3068
    // Predicated region
    $region34: #{tpu_custom_call.1} parent=1 // pred_check
      _
    $region35: #{tpu_custom_call.1} parent=1 // pred_check_branch
      %3071 = sbr.rel (0) target = $region37
    $region36: #{tpu_custom_call.1} parent=1 // pred_region
      %s3073 = ssub.s32 32, 32
      %3074 = vsyncadd [#allocation3], %s3073
      %s3076 = sshll.u32 [#allocation2], 4
      %s3077 = int_to_ptr.vmem [resolvable:$true] %s3076
      %3079 = dma.vmem_to_hbm [thread:$0]  %s3077, 32, %s8, [#allocation3]
    $region37: #{tpu_custom_call.1} parent=1 // pred_fallthru
      _
    // Predicated region
    $region38: #{tpu_custom_call.1} parent=1 // pred_check
      _
    $region39: #{tpu_custom_call.1} parent=1 // pred_check_branch
      %3081 = sbr.rel (0) target = $region41
    $region40: #{tpu_custom_call.1} parent=1 // pred_region
      %3082 = dma.done [#allocation3], 32
    $region41: #{tpu_custom_call.1} parent=1 // pred_fallthru
      _
    %3083 = vsyncpa [#allocation3], 1

</llo_original>
